<compile_context>
chip_gen: v7x
topology: tpu7x:2x2x1
jax: 0.10.0
libtpu: 0.0.40
codegen_flags: <defaults>
</compile_context>

<pallas_src>
import functools

import jax
import jax.numpy as jnp
import numpy as np
from jax.experimental import pallas as pl
from jax.experimental.pallas import tpu as pltpu


def _round_up(x, m):
    return ((x + m - 1) // m) * m


def _num_tensorcores():
    try:
        dev = jax.devices()[0]
        n = getattr(dev, "num_cores", None)
        if isinstance(n, int) and n >= 1:
            return n
    except Exception:
        pass
    return 1


def _choose_chunks(batch, bc_cap, ncores):
    """Pick (Bc, Bp, nb): Bc mult of 8, Bp = nb*Bc >= batch, nb ~ mult of ncores."""
    b_up = _round_up(batch, 8)
    bc = max(8, min(bc_cap, b_up))
    nb = -(-b_up // bc)
    bc = _round_up(-(-b_up // nb), 8)          # rebalance (less batch padding)
    nb = -(-b_up // bc)
    if ncores > 1 and b_up >= 8 * ncores and nb % ncores:
        nb = -(-nb // ncores) * ncores         # keep both TensorCores busy (v7x)
        bc = _round_up(-(-b_up // nb), 8)
        nb = -(-b_up // bc)
    return bc, nb * bc, nb


def _lstm_kernel(num_layers, seq_len, H, Hs, G, unroll,
                 proj0_hbm, w_ih_ref, w_hh_ref, b_ref, out_ref,
                 proj_scr, seq_scr, h_scr, c_scr, dma_sem):
    """Grid = (batch_chunk, layer); layer axis innermost (sequential).

    proj0_hbm: (nb, S, Bc, G) f32  precomputed layer-0 projection (HBM / ANY)
    w_ih_ref:  (1, Hs, G)  bf16    this layer's W_ih^T (packed gates), layers>=1
    w_hh_ref:  (1, Hs, G)  bf16    this layer's W_hh^T (packed gates)
    b_ref:     (1, 1, G)   f32     combined bias (b_ih + b_hh), layers>=1
    out_ref:   (Bc, Hs)    f32     hidden[-1] for this batch chunk
    proj_scr:  (S, Bc, G)  f32     per-time-step input projection (+bias)
    seq_scr:   (S, Bc, Hs) f32     this layer's h outputs = next layer's input
    h_scr/c_scr:                   recurrent state
    """
    b_idx = pl.program_id(0)
    layer = pl.program_id(1)
    Bc = h_scr.shape[0]

    # ---- layer 0: start pulling this chunk's precomputed x-projection ------
    @pl.when(layer == 0)
    def _():
        pltpu.make_async_copy(proj0_hbm.at[b_idx], proj_scr, dma_sem).start()

    # ---- layers >= 1: whole-sequence input projection in one MXU matmul ----
    if num_layers > 1:
        @pl.when(layer > 0)
        def _():
            seq2d = seq_scr[...].reshape(seq_len * Bc, Hs).astype(w_ih_ref.dtype)
            proj = jnp.dot(seq2d, w_ih_ref[0],
                           preferred_element_type=jnp.float32) + b_ref[0]
            proj_scr[...] = proj.reshape(seq_len, Bc, G)

    # Fresh h0 = c0 = 0 for every layer (PyTorch default); overlaps the DMA.
    h_scr[...] = jnp.zeros_like(h_scr)
    c_scr[...] = jnp.zeros_like(c_scr)

    @pl.when(layer == 0)
    def _():
        pltpu.make_async_copy(proj0_hbm.at[b_idx], proj_scr, dma_sem).wait()

    def gate(gates, g):
        """Extract gate g (width H) from the packed (Bc, G) gate block."""
        off = g * H
        if off % 128 == 0:                       # lane-aligned: plain slice
            return gates[:, off:off + H]
        # Not lane-aligned: rotate the wanted gate to lane 0 (XLU slot, cheap)
        # and take an offset-0 slice.
        return pltpu.roll(gates, shift=G - off, axis=1)[:, 0:H]

    def cell(t, gates):
        i_g = jax.nn.sigmoid(gate(gates, 0))
        f_g = jax.nn.sigmoid(gate(gates, 1))
        g_g = jnp.tanh(gate(gates, 2))           # tanh only on the g block
        o_g = jax.nn.sigmoid(gate(gates, 3))
        c_new = f_g * c_scr[...] + i_g * g_g
        h_new = o_g * jnp.tanh(c_new)
        c_scr[...] = c_new
        h_scr[:, 0:H] = h_new                    # lane-padded columns stay 0
        if num_layers > 1:
            # This step's hidden state becomes the next layer's input at time t
            # (full-width store: padded columns copied from h_scr are zero).
            seq_scr[t] = h_scr[...].astype(seq_scr.dtype)

    # t = 0 peeled: h0 == 0, so the gates are just the input projection.
    cell(0, proj_scr[0])

    # Serial recurrence: only h @ W_hh + elementwise gate math per step.
    def step(t, carry):
        h = h_scr[...].astype(w_hh_ref.dtype)
        gates = proj_scr[t] + jnp.dot(h, w_hh_ref[0],
                                      preferred_element_type=jnp.float32)
        cell(t, gates)
        return carry

    jax.lax.fori_loop(1, seq_len, step, 0, unroll=unroll)

    @pl.when(layer == num_layers - 1)
    def _():
        out_ref[...] = h_scr[...]                # hidden[-1] (padded cols = 0)


def lstm_expert_forward(x_bsd, params, *, weight_dtype=jnp.bfloat16,
                        max_batch_chunk=256):
    """x_bsd: (B, S, D) float32.

    params: list (per layer) of PyTorch-style tensors
        (w_ih (4H, in_dim), w_hh (4H, H), b_ih (4H,), b_hh (4H,)),
    gate order (i, f, g, o).  Returns hidden[-1]: (B, H) float32.
    """
    x_bsd = jnp.asarray(x_bsd, jnp.float32)
    B, S, D = x_bsd.shape
    L = len(params)
    H = params[0][1].shape[1]                    # w_hh: (4H, H)

    LANE, SUB = 128, 8
    Hs = _round_up(H, LANE)                      # padded hidden width (matmul K)
    G = _round_up(4 * H, LANE)                   # packed gate width (stride H)
    f32b = 4
    wb = jnp.dtype(weight_dtype).itemsize

    # ---- VMEM budget -> batch chunk -------------------------------------
    try:
        phys_vmem = int(pltpu.get_tpu_info().vmem_capacity_bytes)
    except Exception:
        phys_vmem = 64 * 1024 * 1024             # v7x-conservative fallback
    per_bc = (S * G * f32b                                  # proj_scr
              + (S * Hs * f32b if L > 1 else 0)             # seq_scr
              + 2 * Hs * f32b                               # h_scr + c_scr
              + 2 * Hs * f32b)                              # double-buffered out
    fixed = (2 * 2 * Hs * G * wb                            # W_ih + W_hh (x2 buf)
             + 2 * SUB * G * f32b)                          # bias block (x2 buf)
    budget = int(0.75 * phys_vmem) - fixed - (8 << 20)
    bc_cap = max(SUB, min(max_batch_chunk,
                          (max(budget, 0) // max(per_bc, 1)) // SUB * SUB))
    Bc, Bp, nb = _choose_chunks(B, bc_cap, _num_tensorcores())

    needed = fixed + per_bc * Bc + (2 << 20)
    vmem_limit = int(min(0.9 * phys_vmem, max(needed + (16 << 20), 32 << 20)))

    unroll = int(max(1, min(8, S - 1)))          # moderate partial unroll

    # ---- layer-0 projection at XLA peak (kernel never sees x or D) -------
    w_ih0, _, b_ih0, b_hh0 = params[0]
    w_ih0 = jnp.asarray(w_ih0, jnp.float32)
    bias0 = jnp.asarray(b_ih0, jnp.float32) + jnp.asarray(b_hh0, jnp.float32)
    proj0 = jnp.dot(x_bsd.reshape(B * S, D), jnp.transpose(w_ih0)) + bias0
    proj0 = proj0.reshape(B, S, 4 * H).transpose(1, 0, 2)            # (S, B, 4H)
    proj0_p = jnp.zeros((S, Bp, G), jnp.float32).at[:, :B, :4 * H].set(proj0)
    proj0_chunks = proj0_p.reshape(S, nb, Bc, G).transpose(1, 0, 2, 3)  # (nb,S,Bc,G)

    # ---- pack / transpose weights (packed gate layout, bf16) --------------
    w_ih_buf = jnp.zeros((L, Hs, G), jnp.float32)
    w_hh_buf = jnp.zeros((L, Hs, G), jnp.float32)
    b_all = jnp.zeros((L, 1, G), jnp.float32)
    for l, (w_ih, w_hh, b_ih, b_hh) in enumerate(params):
        w_hh = jnp.asarray(w_hh, jnp.float32)
        b = jnp.asarray(b_ih, jnp.float32) + jnp.asarray(b_hh, jnp.float32)
        if l > 0:                                 # layers >= 1: input is prev h
            w_ih_buf = w_ih_buf.at[l, :H, :4 * H].set(
                jnp.transpose(jnp.asarray(w_ih, jnp.float32)))
        w_hh_buf = w_hh_buf.at[l, :H, :4 * H].set(jnp.transpose(w_hh))
        b_all = b_all.at[l, 0, :4 * H].set(b)
    w_ih_all = w_ih_buf.astype(weight_dtype)
    w_hh_all = w_hh_buf.astype(weight_dtype)

    kernel = functools.partial(_lstm_kernel, L, S, H, Hs, G, unroll)

    out_pad = pl.pallas_call(
        kernel,
        out_shape=jax.ShapeDtypeStruct((Bp, Hs), jnp.float32),
        grid_spec=pltpu.PrefetchScalarGridSpec(
            num_scalar_prefetch=0,
            grid=(nb, L),
            in_specs=[
                pl.BlockSpec(memory_space=pl.ANY),                    # proj0 (HBM)
                pl.BlockSpec((1, Hs, G), lambda b, l: (l, 0, 0)),     # W_ih^T
                pl.BlockSpec((1, Hs, G), lambda b, l: (l, 0, 0)),     # W_hh^T
                pl.BlockSpec((1, 1, G), lambda b, l: (l, 0, 0)),      # bias
            ],
            out_specs=pl.BlockSpec((Bc, Hs), lambda b, l: (b, 0)),
            scratch_shapes=[
                pltpu.VMEM((S, Bc, G), jnp.float32),                  # proj_scr
                pltpu.VMEM((S if L > 1 else 1, Bc, Hs), jnp.float32), # seq_scr
                pltpu.VMEM((Bc, Hs), jnp.float32),                    # h state
                pltpu.VMEM((Bc, H), jnp.float32),                     # c state
                pltpu.SemaphoreType.DMA,                              # proj0 DMA
            ],
        ),
        compiler_params=pltpu.CompilerParams(
            dimension_semantics=("parallel", "arbitrary"),
            vmem_limit_bytes=vmem_limit,
        ),
    )(proj0_chunks, w_ih_all, w_hh_all, b_all)

    return out_pad[:B, :H]


def _init_lstm_params(key, input_dim, hidden_dim, num_layers):
    """Deterministic PyTorch-style LSTM init: U(-1/sqrt(H), 1/sqrt(H))."""
    k = 1.0 / np.sqrt(hidden_dim)
    params = []
    for layer in range(num_layers):
        in_dim = input_dim if layer == 0 else hidden_dim
        key, k1, k2, k3, k4 = jax.random.split(key, 5)
        w_ih = jax.random.uniform(k1, (4 * hidden_dim, in_dim), jnp.float32, -k, k)
        w_hh = jax.random.uniform(k2, (4 * hidden_dim, hidden_dim), jnp.float32, -k, k)
        b_ih = jax.random.uniform(k3, (4 * hidden_dim,), jnp.float32, -k, k)
        b_hh = jax.random.uniform(k4, (4 * hidden_dim,), jnp.float32, -k, k)
        params.append((w_ih, w_hh, b_ih, b_hh))
    return params


def _reference_forward(x_bsd, params):
    """Pure-JAX (f32) reference of nn.LSTM(batch_first=True) returning hidden[-1]."""
    B, S, _ = x_bsd.shape
    inp_seq = x_bsd
    h_last = None
    for (w_ih, w_hh, b_ih, b_hh) in params:
        H = w_hh.shape[1]
        h = jnp.zeros((B, H), jnp.float32)
        c = jnp.zeros((B, H), jnp.float32)
        outs = []
        for t in range(S):
            gates = inp_seq[:, t, :] @ w_ih.T + h @ w_hh.T + b_ih + b_hh
            i_g = jax.nn.sigmoid(gates[:, 0 * H:1 * H])
            f_g = jax.nn.sigmoid(gates[:, 1 * H:2 * H])
            g_g = jnp.tanh(gates[:, 2 * H:3 * H])
            o_g = jax.nn.sigmoid(gates[:, 3 * H:4 * H])
            c = f_g * c + i_g * g_g
            h = o_g * jnp.tanh(c)
            outs.append(h)
        inp_seq = jnp.stack(outs, axis=1)
        h_last = h
    return h_last


if __name__ == "__main__":
    B, S, D, H, L = 2, 8, 16, 32, 2

    key = jax.random.PRNGKey(0)
    key, kx, kp = jax.random.split(key, 3)
    x = jax.random.normal(kx, (B, S, D), jnp.float32)
    params = _init_lstm_params(kp, D, H, L)

    out = lstm_expert_forward(x, params)
    out = jax.block_until_ready(out)

    ref = _reference_forward(x, params)
    # Weights are streamed as bf16 (f32 accumulation), so tolerance is loosened
    # versus the pure-f32 reference per the review's note.
    np.testing.assert_allclose(np.asarray(out), np.asarray(ref), rtol=3e-2, atol=3e-2)

    print("KERNEL_OK")
</pallas_src>

<mosaic_0001>
module attributes {stable_mosaic.version = 11 : i64} {
  func.func @_lstm_kernel(%arg0: i32, %arg1: i32, %arg2: memref<1x8x8x128xf32, #tpu.memory_space<any>>, %arg3: memref<1x128x128xbf16, #tpu.memory_space<vmem>>, %arg4: memref<1x128x128xbf16, #tpu.memory_space<vmem>>, %arg5: memref<1x1x128xf32, #tpu.memory_space<vmem>>, %arg6: memref<8x128xf32, #tpu.memory_space<vmem>>, %arg7: memref<8x8x128xf32, #tpu.memory_space<vmem>>, %arg8: memref<8x8x128xf32, #tpu.memory_space<vmem>>, %arg9: memref<8x128xf32, #tpu.memory_space<vmem>>, %arg10: memref<8x32xf32, #tpu.memory_space<vmem>>, %arg11: memref<!tpu.dma_semaphore, #tpu.memory_space<semaphore_mem>>) attributes {dimension_semantics = [#tpu.dimension_semantics<parallel>, #tpu.dimension_semantics<arbitrary>], iteration_bounds = array<i64: 1, 2>, scalar_prefetch = 0 : i64, scratch_operands = 5 : i64, tpu.core_type = #tpu.core_type<tc>, window_params = [{}, {transform_indices = @transform_1, window_bounds = array<i64: 1, 128, 128>}, {transform_indices = @transform_2, window_bounds = array<i64: 1, 128, 128>}, {transform_indices = @transform_3, window_bounds = array<i64: 1, 1, 128>}, {transform_indices = @transform_4, window_bounds = array<i64: 8, 128>}]} {
    %c0_i32 = arith.constant 0 : i32
    %0 = arith.cmpi eq, %arg1, %c0_i32 : i32
    %1 = arith.extui %0 : i1 to i32
    %c0_i32_0 = arith.constant 0 : i32
    %2 = arith.cmpi ne, %1, %c0_i32_0 : i32
    scf.if %2 {
      %c0_i32_197 = arith.constant 0 : i32
      %c0_i32_198 = arith.constant 0 : i32
      %c0_i32_199 = arith.constant 0 : i32
      %368 = tpu.memref_slice %arg2[%arg0, %c0_i32_197, %c0_i32_198, %c0_i32_199] : memref<1x8x8x128xf32, #tpu.memory_space<any>> -> memref<1x8x8x128xf32, #tpu.memory_space<any>>
      %369 = tpu.memref_squeeze %368 : memref<1x8x8x128xf32, #tpu.memory_space<any>> -> memref<8x8x128xf32, #tpu.memory_space<any>>
      tpu.enqueue_dma source(%369 : memref<8x8x128xf32, #tpu.memory_space<any>>) target(%arg7 : memref<8x8x128xf32, #tpu.memory_space<vmem>>) target_semaphore(%arg11 : memref<!tpu.dma_semaphore, #tpu.memory_space<semaphore_mem>>)
    } else {
    }
    %c0_i32_1 = arith.constant 0 : i32
    %3 = arith.cmpi sgt, %arg1, %c0_i32_1 : i32
    %4 = arith.extui %3 : i1 to i32
    %c0_i32_2 = arith.constant 0 : i32
    %5 = arith.cmpi ne, %4, %c0_i32_2 : i32
    scf.if %5 {
      %c0_197 = arith.constant 0 : index
      %c0_198 = arith.constant 0 : index
      %c0_199 = arith.constant 0 : index
      %368 = vector.load %arg8[%c0_197, %c0_198, %c0_199] : memref<8x8x128xf32, #tpu.memory_space<vmem>>, vector<8x8x128xf32>
      %369 = vector.shape_cast %368 : vector<8x8x128xf32> to vector<64x128xf32>
      %370 = arith.truncf %369 : vector<64x128xf32> to vector<64x128xbf16>
      %c0_200 = arith.constant 0 : index
      %c0_201 = arith.constant 0 : index
      %c0_202 = arith.constant 0 : index
      %371 = vector.load %arg3[%c0_200, %c0_201, %c0_202] : memref<1x128x128xbf16, #tpu.memory_space<vmem>>, vector<1x128x128xbf16>
      %372 = vector.shape_cast %371 : vector<1x128x128xbf16> to vector<128x128xbf16>
      %cst_203 = arith.constant dense<0.000000e+00> : vector<64x128xf32>
      %373 = tpu.matmul %370, %372, %cst_203 {dimension_numbers = #tpu.dot_dimension_numbers<[1], [0], [0], [1], [0, 0, 1, 1], [], []>} : vector<64x128xbf16>, vector<128x128xbf16>, vector<64x128xf32> -> vector<64x128xf32>
      %c0_204 = arith.constant 0 : index
      %c0_205 = arith.constant 0 : index
      %c0_206 = arith.constant 0 : index
      %374 = vector.load %arg5[%c0_204, %c0_205, %c0_206] : memref<1x1x128xf32, #tpu.memory_space<vmem>>, vector<1x1x128xf32>
      %375 = vector.shape_cast %374 : vector<1x1x128xf32> to vector<1x128xf32>
      %376 = vector.broadcast %375 : vector<1x128xf32> to vector<64x128xf32>
      %377 = arith.addf %373, %376 : vector<64x128xf32>
      %378 = vector.shape_cast %377 : vector<64x128xf32> to vector<8x8x128xf32>
      %c0_207 = arith.constant 0 : index
      %c0_208 = arith.constant 0 : index
      %c0_209 = arith.constant 0 : index
      %379 = vector.load %arg7[%c0_207, %c0_208, %c0_209] : memref<8x8x128xf32, #tpu.memory_space<vmem>>, vector<8x8x128xf32>
      tpu.vector_store %arg7[%c0_207, %c0_208, %c0_209], %378 {strides = array<i32>} : memref<8x8x128xf32, #tpu.memory_space<vmem>>, vector<8x8x128xf32>,
    } else {
    }
    %cst = arith.constant 0.000000e+00 : f32
    %6 = vector.broadcast %cst : f32 to vector<8x128xf32>
    %c0 = arith.constant 0 : index
    %c0_3 = arith.constant 0 : index
    %7 = vector.load %arg9[%c0, %c0_3] : memref<8x128xf32, #tpu.memory_space<vmem>>, vector<8x128xf32>
    tpu.vector_store %arg9[%c0, %c0_3], %6 {strides = array<i32>} : memref<8x128xf32, #tpu.memory_space<vmem>>, vector<8x128xf32>,
    %cst_4 = arith.constant 0.000000e+00 : f32
    %8 = vector.broadcast %cst_4 : f32 to vector<8x32xf32>
    %c0_5 = arith.constant 0 : index
    %c0_6 = arith.constant 0 : index
    %9 = vector.load %arg10[%c0_5, %c0_6] : memref<8x32xf32, #tpu.memory_space<vmem>>, vector<8x32xf32>
    tpu.vector_store %arg10[%c0_5, %c0_6], %8 {strides = array<i32>} : memref<8x32xf32, #tpu.memory_space<vmem>>, vector<8x32xf32>,
    %c0_i32_7 = arith.constant 0 : i32
    %10 = arith.cmpi eq, %arg1, %c0_i32_7 : i32
    %11 = arith.extui %10 : i1 to i32
    %c0_i32_8 = arith.constant 0 : i32
    %12 = arith.cmpi ne, %11, %c0_i32_8 : i32
    scf.if %12 {
      %c0_i32_197 = arith.constant 0 : i32
      %c0_i32_198 = arith.constant 0 : i32
      %c0_i32_199 = arith.constant 0 : i32
      %368 = tpu.memref_slice %arg2[%arg0, %c0_i32_197, %c0_i32_198, %c0_i32_199] : memref<1x8x8x128xf32, #tpu.memory_space<any>> -> memref<1x8x8x128xf32, #tpu.memory_space<any>>
      %369 = tpu.memref_squeeze %368 : memref<1x8x8x128xf32, #tpu.memory_space<any>> -> memref<8x8x128xf32, #tpu.memory_space<any>>
      tpu.wait_dma2 semaphore(%arg11 : memref<!tpu.dma_semaphore, #tpu.memory_space<semaphore_mem>>) src(%369 : memref<8x8x128xf32, #tpu.memory_space<any>>) dst(%arg7 : memref<8x8x128xf32, #tpu.memory_space<vmem>>)
    } else {
    }
    %c0_9 = arith.constant 0 : index
    %c0_10 = arith.constant 0 : index
    %c0_11 = arith.constant 0 : index
    %13 = vector.load %arg7[%c0_9, %c0_10, %c0_11] : memref<8x8x128xf32, #tpu.memory_space<vmem>>, vector<1x8x128xf32>
    %14 = vector.shape_cast %13 : vector<1x8x128xf32> to vector<8x128xf32>
    %15 = vector.extract_strided_slice %14 {offsets = [0, 0], sizes = [8, 32], strides = [1, 1]} : vector<8x128xf32> to vector<8x32xf32>
    %16 = arith.negf %15 : vector<8x32xf32>
    %17 = math.exp %16 : vector<8x32xf32>
    %cst_12 = arith.constant 1.000000e+00 : f32
    %18 = vector.broadcast %cst_12 : f32 to vector<8x32xf32>
    %19 = arith.addf %18, %17 : vector<8x32xf32>
    %20 = arith.divf %18, %19 : vector<8x32xf32>
    %c96_i32 = arith.constant 96 : i32
    %21 = tpu.dynamic_rotate %14 by %c96_i32 dim 1 : vector<8x128xf32>, i32 -> vector<8x128xf32>
    %22 = vector.extract_strided_slice %21 {offsets = [0, 0], sizes = [8, 32], strides = [1, 1]} : vector<8x128xf32> to vector<8x32xf32>
    %23 = arith.negf %22 : vector<8x32xf32>
    %24 = math.exp %23 : vector<8x32xf32>
    %cst_13 = arith.constant 1.000000e+00 : f32
    %25 = vector.broadcast %cst_13 : f32 to vector<8x32xf32>
    %26 = arith.addf %25, %24 : vector<8x32xf32>
    %27 = arith.divf %25, %26 : vector<8x32xf32>
    %c64_i32 = arith.constant 64 : i32
    %28 = tpu.dynamic_rotate %14 by %c64_i32 dim 1 : vector<8x128xf32>, i32 -> vector<8x128xf32>
    %29 = vector.extract_strided_slice %28 {offsets = [0, 0], sizes = [8, 32], strides = [1, 1]} : vector<8x128xf32> to vector<8x32xf32>
    %30 = math.tanh %29 : vector<8x32xf32>
    %c32_i32 = arith.constant 32 : i32
    %31 = tpu.dynamic_rotate %14 by %c32_i32 dim 1 : vector<8x128xf32>, i32 -> vector<8x128xf32>
    %32 = vector.extract_strided_slice %31 {offsets = [0, 0], sizes = [8, 32], strides = [1, 1]} : vector<8x128xf32> to vector<8x32xf32>
    %33 = arith.negf %32 : vector<8x32xf32>
    %34 = math.exp %33 : vector<8x32xf32>
    %cst_14 = arith.constant 1.000000e+00 : f32
    %35 = vector.broadcast %cst_14 : f32 to vector<8x32xf32>
    %36 = arith.addf %35, %34 : vector<8x32xf32>
    %37 = arith.divf %35, %36 : vector<8x32xf32>
    %c0_15 = arith.constant 0 : index
    %c0_16 = arith.constant 0 : index
    %38 = vector.load %arg10[%c0_15, %c0_16] : memref<8x32xf32, #tpu.memory_space<vmem>>, vector<8x32xf32>
    %39 = arith.mulf %27, %38 : vector<8x32xf32>
    %40 = arith.mulf %20, %30 : vector<8x32xf32>
    %41 = arith.addf %39, %40 : vector<8x32xf32>
    %42 = math.tanh %41 : vector<8x32xf32>
    %43 = arith.mulf %37, %42 : vector<8x32xf32>
    %c0_17 = arith.constant 0 : index
    %c0_18 = arith.constant 0 : index
    %44 = vector.load %arg10[%c0_17, %c0_18] : memref<8x32xf32, #tpu.memory_space<vmem>>, vector<8x32xf32>
    tpu.vector_store %arg10[%c0_17, %c0_18], %41 {strides = array<i32>} : memref<8x32xf32, #tpu.memory_space<vmem>>, vector<8x32xf32>,
    %c0_19 = arith.constant 0 : index
    %c0_20 = arith.constant 0 : index
    %45 = vector.load %arg9[%c0_19, %c0_20] : memref<8x128xf32, #tpu.memory_space<vmem>>, vector<8x32xf32>
    tpu.vector_store %arg9[%c0_19, %c0_20], %43 {strides = array<i32>} : memref<8x128xf32, #tpu.memory_space<vmem>>, vector<8x32xf32>,
    %c0_21 = arith.constant 0 : index
    %c0_22 = arith.constant 0 : index
    %46 = vector.load %arg9[%c0_21, %c0_22] : memref<8x128xf32, #tpu.memory_space<vmem>>, vector<8x128xf32>
    %c0_23 = arith.constant 0 : index
    %c0_24 = arith.constant 0 : index
    %c0_25 = arith.constant 0 : index
    %47 = vector.load %arg8[%c0_23, %c0_24, %c0_25] : memref<8x8x128xf32, #tpu.memory_space<vmem>>, vector<1x8x128xf32>
    %48 = vector.shape_cast %47 : vector<1x8x128xf32> to vector<8x128xf32>
    %49 = vector.shape_cast %46 : vector<8x128xf32> to vector<1x8x128xf32>
    tpu.vector_store %arg8[%c0_23, %c0_24, %c0_25], %49 {strides = array<i32>} : memref<8x8x128xf32, #tpu.memory_space<vmem>>, vector<1x8x128xf32>,
    %c1_i32 = arith.constant 1 : i32
    %c0_26 = arith.constant 0 : index
    %c0_27 = arith.constant 0 : index
    %50 = vector.load %arg9[%c0_26, %c0_27] : memref<8x128xf32, #tpu.memory_space<vmem>>, vector<8x128xf32>
    %51 = arith.truncf %50 : vector<8x128xf32> to vector<8x128xbf16>
    %52 = arith.index_cast %c1_i32 : i32 to index
    %c0_28 = arith.constant 0 : index
    %c0_29 = arith.constant 0 : index
    %53 = vector.load %arg7[%52, %c0_28, %c0_29] : memref<8x8x128xf32, #tpu.memory_space<vmem>>, vector<1x8x128xf32>
    %54 = vector.shape_cast %53 : vector<1x8x128xf32> to vector<8x128xf32>
    %c0_30 = arith.constant 0 : index
    %c0_31 = arith.constant 0 : index
    %c0_32 = arith.constant 0 : index
    %55 = vector.load %arg4[%c0_30, %c0_31, %c0_32] : memref<1x128x128xbf16, #tpu.memory_space<vmem>>, vector<1x128x128xbf16>
    %56 = vector.shape_cast %55 : vector<1x128x128xbf16> to vector<128x128xbf16>
    %cst_33 = arith.constant dense<0.000000e+00> : vector<8x128xf32>
    %57 = tpu.matmul %51, %56, %cst_33 {dimension_numbers = #tpu.dot_dimension_numbers<[1], [0], [0], [1], [0, 0, 1, 1], [], []>} : vector<8x128xbf16>, vector<128x128xbf16>, vector<8x128xf32> -> vector<8x128xf32>
    %58 = arith.addf %54, %57 : vector<8x128xf32>
    %59 = vector.extract_strided_slice %58 {offsets = [0, 0], sizes = [8, 32], strides = [1, 1]} : vector<8x128xf32> to vector<8x32xf32>
    %60 = arith.negf %59 : vector<8x32xf32>
    %61 = math.exp %60 : vector<8x32xf32>
    %cst_34 = arith.constant 1.000000e+00 : f32
    %62 = vector.broadcast %cst_34 : f32 to vector<8x32xf32>
    %63 = arith.addf %62, %61 : vector<8x32xf32>
    %64 = arith.divf %62, %63 : vector<8x32xf32>
    %c96_i32_35 = arith.constant 96 : i32
    %65 = tpu.dynamic_rotate %58 by %c96_i32_35 dim 1 : vector<8x128xf32>, i32 -> vector<8x128xf32>
    %66 = vector.extract_strided_slice %65 {offsets = [0, 0], sizes = [8, 32], strides = [1, 1]} : vector<8x128xf32> to vector<8x32xf32>
    %67 = arith.negf %66 : vector<8x32xf32>
    %68 = math.exp %67 : vector<8x32xf32>
    %cst_36 = arith.constant 1.000000e+00 : f32
    %69 = vector.broadcast %cst_36 : f32 to vector<8x32xf32>
    %70 = arith.addf %69, %68 : vector<8x32xf32>
    %71 = arith.divf %69, %70 : vector<8x32xf32>
    %c64_i32_37 = arith.constant 64 : i32
    %72 = tpu.dynamic_rotate %58 by %c64_i32_37 dim 1 : vector<8x128xf32>, i32 -> vector<8x128xf32>
    %73 = vector.extract_strided_slice %72 {offsets = [0, 0], sizes = [8, 32], strides = [1, 1]} : vector<8x128xf32> to vector<8x32xf32>
    %74 = math.tanh %73 : vector<8x32xf32>
    %c32_i32_38 = arith.constant 32 : i32
    %75 = tpu.dynamic_rotate %58 by %c32_i32_38 dim 1 : vector<8x128xf32>, i32 -> vector<8x128xf32>
    %76 = vector.extract_strided_slice %75 {offsets = [0, 0], sizes = [8, 32], strides = [1, 1]} : vector<8x128xf32> to vector<8x32xf32>
    %77 = arith.negf %76 : vector<8x32xf32>
    %78 = math.exp %77 : vector<8x32xf32>
    %cst_39 = arith.constant 1.000000e+00 : f32
    %79 = vector.broadcast %cst_39 : f32 to vector<8x32xf32>
    %80 = arith.addf %79, %78 : vector<8x32xf32>
    %81 = arith.divf %79, %80 : vector<8x32xf32>
    %c0_40 = arith.constant 0 : index
    %c0_41 = arith.constant 0 : index
    %82 = vector.load %arg10[%c0_40, %c0_41] : memref<8x32xf32, #tpu.memory_space<vmem>>, vector<8x32xf32>
    %83 = arith.mulf %71, %82 : vector<8x32xf32>
    %84 = arith.mulf %64, %74 : vector<8x32xf32>
    %85 = arith.addf %83, %84 : vector<8x32xf32>
    %86 = math.tanh %85 : vector<8x32xf32>
    %87 = arith.mulf %81, %86 : vector<8x32xf32>
    %c0_42 = arith.constant 0 : index
    %c0_43 = arith.constant 0 : index
    %88 = vector.load %arg10[%c0_42, %c0_43] : memref<8x32xf32, #tpu.memory_space<vmem>>, vector<8x32xf32>
    tpu.vector_store %arg10[%c0_42, %c0_43], %85 {strides = array<i32>} : memref<8x32xf32, #tpu.memory_space<vmem>>, vector<8x32xf32>,
    %c0_44 = arith.constant 0 : index
    %c0_45 = arith.constant 0 : index
    %89 = vector.load %arg9[%c0_44, %c0_45] : memref<8x128xf32, #tpu.memory_space<vmem>>, vector<8x32xf32>
    tpu.vector_store %arg9[%c0_44, %c0_45], %87 {strides = array<i32>} : memref<8x128xf32, #tpu.memory_space<vmem>>, vector<8x32xf32>,
    %c0_46 = arith.constant 0 : index
    %c0_47 = arith.constant 0 : index
    %90 = vector.load %arg9[%c0_46, %c0_47] : memref<8x128xf32, #tpu.memory_space<vmem>>, vector<8x128xf32>
    %91 = arith.index_cast %c1_i32 : i32 to index
    %c0_48 = arith.constant 0 : index
    %c0_49 = arith.constant 0 : index
    %92 = vector.load %arg8[%91, %c0_48, %c0_49] : memref<8x8x128xf32, #tpu.memory_space<vmem>>, vector<1x8x128xf32>
    %93 = vector.shape_cast %92 : vector<1x8x128xf32> to vector<8x128xf32>
    %94 = vector.shape_cast %90 : vector<8x128xf32> to vector<1x8x128xf32>
    tpu.vector_store %arg8[%91, %c0_48, %c0_49], %94 {strides = array<i32>} : memref<8x8x128xf32, #tpu.memory_space<vmem>>, vector<1x8x128xf32>,
    %c2_i32 = arith.constant 2 : i32
    %c0_50 = arith.constant 0 : index
    %c0_51 = arith.constant 0 : index
    %95 = vector.load %arg9[%c0_50, %c0_51] : memref<8x128xf32, #tpu.memory_space<vmem>>, vector<8x128xf32>
    %96 = arith.truncf %95 : vector<8x128xf32> to vector<8x128xbf16>
    %97 = arith.index_cast %c2_i32 : i32 to index
    %c0_52 = arith.constant 0 : index
    %c0_53 = arith.constant 0 : index
    %98 = vector.load %arg7[%97, %c0_52, %c0_53] : memref<8x8x128xf32, #tpu.memory_space<vmem>>, vector<1x8x128xf32>
    %99 = vector.shape_cast %98 : vector<1x8x128xf32> to vector<8x128xf32>
    %c0_54 = arith.constant 0 : index
    %c0_55 = arith.constant 0 : index
    %c0_56 = arith.constant 0 : index
    %100 = vector.load %arg4[%c0_54, %c0_55, %c0_56] : memref<1x128x128xbf16, #tpu.memory_space<vmem>>, vector<1x128x128xbf16>
    %101 = vector.shape_cast %100 : vector<1x128x128xbf16> to vector<128x128xbf16>
    %cst_57 = arith.constant dense<0.000000e+00> : vector<8x128xf32>
    %102 = tpu.matmul %96, %101, %cst_57 {dimension_numbers = #tpu.dot_dimension_numbers<[1], [0], [0], [1], [0, 0, 1, 1], [], []>} : vector<8x128xbf16>, vector<128x128xbf16>, vector<8x128xf32> -> vector<8x128xf32>
    %103 = arith.addf %99, %102 : vector<8x128xf32>
    %104 = vector.extract_strided_slice %103 {offsets = [0, 0], sizes = [8, 32], strides = [1, 1]} : vector<8x128xf32> to vector<8x32xf32>
    %105 = arith.negf %104 : vector<8x32xf32>
    %106 = math.exp %105 : vector<8x32xf32>
    %cst_58 = arith.constant 1.000000e+00 : f32
    %107 = vector.broadcast %cst_58 : f32 to vector<8x32xf32>
    %108 = arith.addf %107, %106 : vector<8x32xf32>
    %109 = arith.divf %107, %108 : vector<8x32xf32>
    %c96_i32_59 = arith.constant 96 : i32
    %110 = tpu.dynamic_rotate %103 by %c96_i32_59 dim 1 : vector<8x128xf32>, i32 -> vector<8x128xf32>
    %111 = vector.extract_strided_slice %110 {offsets = [0, 0], sizes = [8, 32], strides = [1, 1]} : vector<8x128xf32> to vector<8x32xf32>
    %112 = arith.negf %111 : vector<8x32xf32>
    %113 = math.exp %112 : vector<8x32xf32>
    %cst_60 = arith.constant 1.000000e+00 : f32
    %114 = vector.broadcast %cst_60 : f32 to vector<8x32xf32>
    %115 = arith.addf %114, %113 : vector<8x32xf32>
    %116 = arith.divf %114, %115 : vector<8x32xf32>
    %c64_i32_61 = arith.constant 64 : i32
    %117 = tpu.dynamic_rotate %103 by %c64_i32_61 dim 1 : vector<8x128xf32>, i32 -> vector<8x128xf32>
    %118 = vector.extract_strided_slice %117 {offsets = [0, 0], sizes = [8, 32], strides = [1, 1]} : vector<8x128xf32> to vector<8x32xf32>
    %119 = math.tanh %118 : vector<8x32xf32>
    %c32_i32_62 = arith.constant 32 : i32
    %120 = tpu.dynamic_rotate %103 by %c32_i32_62 dim 1 : vector<8x128xf32>, i32 -> vector<8x128xf32>
    %121 = vector.extract_strided_slice %120 {offsets = [0, 0], sizes = [8, 32], strides = [1, 1]} : vector<8x128xf32> to vector<8x32xf32>
    %122 = arith.negf %121 : vector<8x32xf32>
    %123 = math.exp %122 : vector<8x32xf32>
    %cst_63 = arith.constant 1.000000e+00 : f32
    %124 = vector.broadcast %cst_63 : f32 to vector<8x32xf32>
    %125 = arith.addf %124, %123 : vector<8x32xf32>
    %126 = arith.divf %124, %125 : vector<8x32xf32>
    %c0_64 = arith.constant 0 : index
    %c0_65 = arith.constant 0 : index
    %127 = vector.load %arg10[%c0_64, %c0_65] : memref<8x32xf32, #tpu.memory_space<vmem>>, vector<8x32xf32>
    %128 = arith.mulf %116, %127 : vector<8x32xf32>
    %129 = arith.mulf %109, %119 : vector<8x32xf32>
    %130 = arith.addf %128, %129 : vector<8x32xf32>
    %131 = math.tanh %130 : vector<8x32xf32>
    %132 = arith.mulf %126, %131 : vector<8x32xf32>
    %c0_66 = arith.constant 0 : index
    %c0_67 = arith.constant 0 : index
    %133 = vector.load %arg10[%c0_66, %c0_67] : memref<8x32xf32, #tpu.memory_space<vmem>>, vector<8x32xf32>
    tpu.vector_store %arg10[%c0_66, %c0_67], %130 {strides = array<i32>} : memref<8x32xf32, #tpu.memory_space<vmem>>, vector<8x32xf32>,
    %c0_68 = arith.constant 0 : index
    %c0_69 = arith.constant 0 : index
    %134 = vector.load %arg9[%c0_68, %c0_69] : memref<8x128xf32, #tpu.memory_space<vmem>>, vector<8x32xf32>
    tpu.vector_store %arg9[%c0_68, %c0_69], %132 {strides = array<i32>} : memref<8x128xf32, #tpu.memory_space<vmem>>, vector<8x32xf32>,
    %c0_70 = arith.constant 0 : index
    %c0_71 = arith.constant 0 : index
    %135 = vector.load %arg9[%c0_70, %c0_71] : memref<8x128xf32, #tpu.memory_space<vmem>>, vector<8x128xf32>
    %136 = arith.index_cast %c2_i32 : i32 to index
    %c0_72 = arith.constant 0 : index
    %c0_73 = arith.constant 0 : index
    %137 = vector.load %arg8[%136, %c0_72, %c0_73] : memref<8x8x128xf32, #tpu.memory_space<vmem>>, vector<1x8x128xf32>
    %138 = vector.shape_cast %137 : vector<1x8x128xf32> to vector<8x128xf32>
    %139 = vector.shape_cast %135 : vector<8x128xf32> to vector<1x8x128xf32>
    tpu.vector_store %arg8[%136, %c0_72, %c0_73], %139 {strides = array<i32>} : memref<8x8x128xf32, #tpu.memory_space<vmem>>, vector<1x8x128xf32>,
    %c3_i32 = arith.constant 3 : i32
    %c0_74 = arith.constant 0 : index
    %c0_75 = arith.constant 0 : index
    %140 = vector.load %arg9[%c0_74, %c0_75] : memref<8x128xf32, #tpu.memory_space<vmem>>, vector<8x128xf32>
    %141 = arith.truncf %140 : vector<8x128xf32> to vector<8x128xbf16>
    %142 = arith.index_cast %c3_i32 : i32 to index
    %c0_76 = arith.constant 0 : index
    %c0_77 = arith.constant 0 : index
    %143 = vector.load %arg7[%142, %c0_76, %c0_77] : memref<8x8x128xf32, #tpu.memory_space<vmem>>, vector<1x8x128xf32>
    %144 = vector.shape_cast %143 : vector<1x8x128xf32> to vector<8x128xf32>
    %c0_78 = arith.constant 0 : index
    %c0_79 = arith.constant 0 : index
    %c0_80 = arith.constant 0 : index
    %145 = vector.load %arg4[%c0_78, %c0_79, %c0_80] : memref<1x128x128xbf16, #tpu.memory_space<vmem>>, vector<1x128x128xbf16>
    %146 = vector.shape_cast %145 : vector<1x128x128xbf16> to vector<128x128xbf16>
    %cst_81 = arith.constant dense<0.000000e+00> : vector<8x128xf32>
    %147 = tpu.matmul %141, %146, %cst_81 {dimension_numbers = #tpu.dot_dimension_numbers<[1], [0], [0], [1], [0, 0, 1, 1], [], []>} : vector<8x128xbf16>, vector<128x128xbf16>, vector<8x128xf32> -> vector<8x128xf32>
    %148 = arith.addf %144, %147 : vector<8x128xf32>
    %149 = vector.extract_strided_slice %148 {offsets = [0, 0], sizes = [8, 32], strides = [1, 1]} : vector<8x128xf32> to vector<8x32xf32>
    %150 = arith.negf %149 : vector<8x32xf32>
    %151 = math.exp %150 : vector<8x32xf32>
    %cst_82 = arith.constant 1.000000e+00 : f32
    %152 = vector.broadcast %cst_82 : f32 to vector<8x32xf32>
    %153 = arith.addf %152, %151 : vector<8x32xf32>
    %154 = arith.divf %152, %153 : vector<8x32xf32>
    %c96_i32_83 = arith.constant 96 : i32
    %155 = tpu.dynamic_rotate %148 by %c96_i32_83 dim 1 : vector<8x128xf32>, i32 -> vector<8x128xf32>
    %156 = vector.extract_strided_slice %155 {offsets = [0, 0], sizes = [8, 32], strides = [1, 1]} : vector<8x128xf32> to vector<8x32xf32>
    %157 = arith.negf %156 : vector<8x32xf32>
    %158 = math.exp %157 : vector<8x32xf32>
    %cst_84 = arith.constant 1.000000e+00 : f32
    %159 = vector.broadcast %cst_84 : f32 to vector<8x32xf32>
    %160 = arith.addf %159, %158 : vector<8x32xf32>
    %161 = arith.divf %159, %160 : vector<8x32xf32>
    %c64_i32_85 = arith.constant 64 : i32
    %162 = tpu.dynamic_rotate %148 by %c64_i32_85 dim 1 : vector<8x128xf32>, i32 -> vector<8x128xf32>
    %163 = vector.extract_strided_slice %162 {offsets = [0, 0], sizes = [8, 32], strides = [1, 1]} : vector<8x128xf32> to vector<8x32xf32>
    %164 = math.tanh %163 : vector<8x32xf32>
    %c32_i32_86 = arith.constant 32 : i32
    %165 = tpu.dynamic_rotate %148 by %c32_i32_86 dim 1 : vector<8x128xf32>, i32 -> vector<8x128xf32>
    %166 = vector.extract_strided_slice %165 {offsets = [0, 0], sizes = [8, 32], strides = [1, 1]} : vector<8x128xf32> to vector<8x32xf32>
    %167 = arith.negf %166 : vector<8x32xf32>
    %168 = math.exp %167 : vector<8x32xf32>
    %cst_87 = arith.constant 1.000000e+00 : f32
    %169 = vector.broadcast %cst_87 : f32 to vector<8x32xf32>
    %170 = arith.addf %169, %168 : vector<8x32xf32>
    %171 = arith.divf %169, %170 : vector<8x32xf32>
    %c0_88 = arith.constant 0 : index
    %c0_89 = arith.constant 0 : index
    %172 = vector.load %arg10[%c0_88, %c0_89] : memref<8x32xf32, #tpu.memory_space<vmem>>, vector<8x32xf32>
    %173 = arith.mulf %161, %172 : vector<8x32xf32>
    %174 = arith.mulf %154, %164 : vector<8x32xf32>
    %175 = arith.addf %173, %174 : vector<8x32xf32>
    %176 = math.tanh %175 : vector<8x32xf32>
    %177 = arith.mulf %171, %176 : vector<8x32xf32>
    %c0_90 = arith.constant 0 : index
    %c0_91 = arith.constant 0 : index
    %178 = vector.load %arg10[%c0_90, %c0_91] : memref<8x32xf32, #tpu.memory_space<vmem>>, vector<8x32xf32>
    tpu.vector_store %arg10[%c0_90, %c0_91], %175 {strides = array<i32>} : memref<8x32xf32, #tpu.memory_space<vmem>>, vector<8x32xf32>,
    %c0_92 = arith.constant 0 : index
    %c0_93 = arith.constant 0 : index
    %179 = vector.load %arg9[%c0_92, %c0_93] : memref<8x128xf32, #tpu.memory_space<vmem>>, vector<8x32xf32>
    tpu.vector_store %arg9[%c0_92, %c0_93], %177 {strides = array<i32>} : memref<8x128xf32, #tpu.memory_space<vmem>>, vector<8x32xf32>,
    %c0_94 = arith.constant 0 : index
    %c0_95 = arith.constant 0 : index
    %180 = vector.load %arg9[%c0_94, %c0_95] : memref<8x128xf32, #tpu.memory_space<vmem>>, vector<8x128xf32>
    %181 = arith.index_cast %c3_i32 : i32 to index
    %c0_96 = arith.constant 0 : index
    %c0_97 = arith.constant 0 : index
    %182 = vector.load %arg8[%181, %c0_96, %c0_97] : memref<8x8x128xf32, #tpu.memory_space<vmem>>, vector<1x8x128xf32>
    %183 = vector.shape_cast %182 : vector<1x8x128xf32> to vector<8x128xf32>
    %184 = vector.shape_cast %180 : vector<8x128xf32> to vector<1x8x128xf32>
    tpu.vector_store %arg8[%181, %c0_96, %c0_97], %184 {strides = array<i32>} : memref<8x8x128xf32, #tpu.memory_space<vmem>>, vector<1x8x128xf32>,
    %c4_i32 = arith.constant 4 : i32
    %c0_98 = arith.constant 0 : index
    %c0_99 = arith.constant 0 : index
    %185 = vector.load %arg9[%c0_98, %c0_99] : memref<8x128xf32, #tpu.memory_space<vmem>>, vector<8x128xf32>
    %186 = arith.truncf %185 : vector<8x128xf32> to vector<8x128xbf16>
    %187 = arith.index_cast %c4_i32 : i32 to index
    %c0_100 = arith.constant 0 : index
    %c0_101 = arith.constant 0 : index
    %188 = vector.load %arg7[%187, %c0_100, %c0_101] : memref<8x8x128xf32, #tpu.memory_space<vmem>>, vector<1x8x128xf32>
    %189 = vector.shape_cast %188 : vector<1x8x128xf32> to vector<8x128xf32>
    %c0_102 = arith.constant 0 : index
    %c0_103 = arith.constant 0 : index
    %c0_104 = arith.constant 0 : index
    %190 = vector.load %arg4[%c0_102, %c0_103, %c0_104] : memref<1x128x128xbf16, #tpu.memory_space<vmem>>, vector<1x128x128xbf16>
    %191 = vector.shape_cast %190 : vector<1x128x128xbf16> to vector<128x128xbf16>
    %cst_105 = arith.constant dense<0.000000e+00> : vector<8x128xf32>
    %192 = tpu.matmul %186, %191, %cst_105 {dimension_numbers = #tpu.dot_dimension_numbers<[1], [0], [0], [1], [0, 0, 1, 1], [], []>} : vector<8x128xbf16>, vector<128x128xbf16>, vector<8x128xf32> -> vector<8x128xf32>
    %193 = arith.addf %189, %192 : vector<8x128xf32>
    %194 = vector.extract_strided_slice %193 {offsets = [0, 0], sizes = [8, 32], strides = [1, 1]} : vector<8x128xf32> to vector<8x32xf32>
    %195 = arith.negf %194 : vector<8x32xf32>
    %196 = math.exp %195 : vector<8x32xf32>
    %cst_106 = arith.constant 1.000000e+00 : f32
    %197 = vector.broadcast %cst_106 : f32 to vector<8x32xf32>
    %198 = arith.addf %197, %196 : vector<8x32xf32>
    %199 = arith.divf %197, %198 : vector<8x32xf32>
    %c96_i32_107 = arith.constant 96 : i32
    %200 = tpu.dynamic_rotate %193 by %c96_i32_107 dim 1 : vector<8x128xf32>, i32 -> vector<8x128xf32>
    %201 = vector.extract_strided_slice %200 {offsets = [0, 0], sizes = [8, 32], strides = [1, 1]} : vector<8x128xf32> to vector<8x32xf32>
    %202 = arith.negf %201 : vector<8x32xf32>
    %203 = math.exp %202 : vector<8x32xf32>
    %cst_108 = arith.constant 1.000000e+00 : f32
    %204 = vector.broadcast %cst_108 : f32 to vector<8x32xf32>
    %205 = arith.addf %204, %203 : vector<8x32xf32>
    %206 = arith.divf %204, %205 : vector<8x32xf32>
    %c64_i32_109 = arith.constant 64 : i32
    %207 = tpu.dynamic_rotate %193 by %c64_i32_109 dim 1 : vector<8x128xf32>, i32 -> vector<8x128xf32>
    %208 = vector.extract_strided_slice %207 {offsets = [0, 0], sizes = [8, 32], strides = [1, 1]} : vector<8x128xf32> to vector<8x32xf32>
    %209 = math.tanh %208 : vector<8x32xf32>
    %c32_i32_110 = arith.constant 32 : i32
    %210 = tpu.dynamic_rotate %193 by %c32_i32_110 dim 1 : vector<8x128xf32>, i32 -> vector<8x128xf32>
    %211 = vector.extract_strided_slice %210 {offsets = [0, 0], sizes = [8, 32], strides = [1, 1]} : vector<8x128xf32> to vector<8x32xf32>
    %212 = arith.negf %211 : vector<8x32xf32>
    %213 = math.exp %212 : vector<8x32xf32>
    %cst_111 = arith.constant 1.000000e+00 : f32
    %214 = vector.broadcast %cst_111 : f32 to vector<8x32xf32>
    %215 = arith.addf %214, %213 : vector<8x32xf32>
    %216 = arith.divf %214, %215 : vector<8x32xf32>
    %c0_112 = arith.constant 0 : index
    %c0_113 = arith.constant 0 : index
    %217 = vector.load %arg10[%c0_112, %c0_113] : memref<8x32xf32, #tpu.memory_space<vmem>>, vector<8x32xf32>
    %218 = arith.mulf %206, %217 : vector<8x32xf32>
    %219 = arith.mulf %199, %209 : vector<8x32xf32>
    %220 = arith.addf %218, %219 : vector<8x32xf32>
    %221 = math.tanh %220 : vector<8x32xf32>
    %222 = arith.mulf %216, %221 : vector<8x32xf32>
    %c0_114 = arith.constant 0 : index
    %c0_115 = arith.constant 0 : index
    %223 = vector.load %arg10[%c0_114, %c0_115] : memref<8x32xf32, #tpu.memory_space<vmem>>, vector<8x32xf32>
    tpu.vector_store %arg10[%c0_114, %c0_115], %220 {strides = array<i32>} : memref<8x32xf32, #tpu.memory_space<vmem>>, vector<8x32xf32>,
    %c0_116 = arith.constant 0 : index
    %c0_117 = arith.constant 0 : index
    %224 = vector.load %arg9[%c0_116, %c0_117] : memref<8x128xf32, #tpu.memory_space<vmem>>, vector<8x32xf32>
    tpu.vector_store %arg9[%c0_116, %c0_117], %222 {strides = array<i32>} : memref<8x128xf32, #tpu.memory_space<vmem>>, vector<8x32xf32>,
    %c0_118 = arith.constant 0 : index
    %c0_119 = arith.constant 0 : index
    %225 = vector.load %arg9[%c0_118, %c0_119] : memref<8x128xf32, #tpu.memory_space<vmem>>, vector<8x128xf32>
    %226 = arith.index_cast %c4_i32 : i32 to index
    %c0_120 = arith.constant 0 : index
    %c0_121 = arith.constant 0 : index
    %227 = vector.load %arg8[%226, %c0_120, %c0_121] : memref<8x8x128xf32, #tpu.memory_space<vmem>>, vector<1x8x128xf32>
    %228 = vector.shape_cast %227 : vector<1x8x128xf32> to vector<8x128xf32>
    %229 = vector.shape_cast %225 : vector<8x128xf32> to vector<1x8x128xf32>
    tpu.vector_store %arg8[%226, %c0_120, %c0_121], %229 {strides = array<i32>} : memref<8x8x128xf32, #tpu.memory_space<vmem>>, vector<1x8x128xf32>,
    %c5_i32 = arith.constant 5 : i32
    %c0_122 = arith.constant 0 : index
    %c0_123 = arith.constant 0 : index
    %230 = vector.load %arg9[%c0_122, %c0_123] : memref<8x128xf32, #tpu.memory_space<vmem>>, vector<8x128xf32>
    %231 = arith.truncf %230 : vector<8x128xf32> to vector<8x128xbf16>
    %232 = arith.index_cast %c5_i32 : i32 to index
    %c0_124 = arith.constant 0 : index
    %c0_125 = arith.constant 0 : index
    %233 = vector.load %arg7[%232, %c0_124, %c0_125] : memref<8x8x128xf32, #tpu.memory_space<vmem>>, vector<1x8x128xf32>
    %234 = vector.shape_cast %233 : vector<1x8x128xf32> to vector<8x128xf32>
    %c0_126 = arith.constant 0 : index
    %c0_127 = arith.constant 0 : index
    %c0_128 = arith.constant 0 : index
    %235 = vector.load %arg4[%c0_126, %c0_127, %c0_128] : memref<1x128x128xbf16, #tpu.memory_space<vmem>>, vector<1x128x128xbf16>
    %236 = vector.shape_cast %235 : vector<1x128x128xbf16> to vector<128x128xbf16>
    %cst_129 = arith.constant dense<0.000000e+00> : vector<8x128xf32>
    %237 = tpu.matmul %231, %236, %cst_129 {dimension_numbers = #tpu.dot_dimension_numbers<[1], [0], [0], [1], [0, 0, 1, 1], [], []>} : vector<8x128xbf16>, vector<128x128xbf16>, vector<8x128xf32> -> vector<8x128xf32>
    %238 = arith.addf %234, %237 : vector<8x128xf32>
    %239 = vector.extract_strided_slice %238 {offsets = [0, 0], sizes = [8, 32], strides = [1, 1]} : vector<8x128xf32> to vector<8x32xf32>
    %240 = arith.negf %239 : vector<8x32xf32>
    %241 = math.exp %240 : vector<8x32xf32>
    %cst_130 = arith.constant 1.000000e+00 : f32
    %242 = vector.broadcast %cst_130 : f32 to vector<8x32xf32>
    %243 = arith.addf %242, %241 : vector<8x32xf32>
    %244 = arith.divf %242, %243 : vector<8x32xf32>
    %c96_i32_131 = arith.constant 96 : i32
    %245 = tpu.dynamic_rotate %238 by %c96_i32_131 dim 1 : vector<8x128xf32>, i32 -> vector<8x128xf32>
    %246 = vector.extract_strided_slice %245 {offsets = [0, 0], sizes = [8, 32], strides = [1, 1]} : vector<8x128xf32> to vector<8x32xf32>
    %247 = arith.negf %246 : vector<8x32xf32>
    %248 = math.exp %247 : vector<8x32xf32>
    %cst_132 = arith.constant 1.000000e+00 : f32
    %249 = vector.broadcast %cst_132 : f32 to vector<8x32xf32>
    %250 = arith.addf %249, %248 : vector<8x32xf32>
    %251 = arith.divf %249, %250 : vector<8x32xf32>
    %c64_i32_133 = arith.constant 64 : i32
    %252 = tpu.dynamic_rotate %238 by %c64_i32_133 dim 1 : vector<8x128xf32>, i32 -> vector<8x128xf32>
    %253 = vector.extract_strided_slice %252 {offsets = [0, 0], sizes = [8, 32], strides = [1, 1]} : vector<8x128xf32> to vector<8x32xf32>
    %254 = math.tanh %253 : vector<8x32xf32>
    %c32_i32_134 = arith.constant 32 : i32
    %255 = tpu.dynamic_rotate %238 by %c32_i32_134 dim 1 : vector<8x128xf32>, i32 -> vector<8x128xf32>
    %256 = vector.extract_strided_slice %255 {offsets = [0, 0], sizes = [8, 32], strides = [1, 1]} : vector<8x128xf32> to vector<8x32xf32>
    %257 = arith.negf %256 : vector<8x32xf32>
    %258 = math.exp %257 : vector<8x32xf32>
    %cst_135 = arith.constant 1.000000e+00 : f32
    %259 = vector.broadcast %cst_135 : f32 to vector<8x32xf32>
    %260 = arith.addf %259, %258 : vector<8x32xf32>
    %261 = arith.divf %259, %260 : vector<8x32xf32>
    %c0_136 = arith.constant 0 : index
    %c0_137 = arith.constant 0 : index
    %262 = vector.load %arg10[%c0_136, %c0_137] : memref<8x32xf32, #tpu.memory_space<vmem>>, vector<8x32xf32>
    %263 = arith.mulf %251, %262 : vector<8x32xf32>
    %264 = arith.mulf %244, %254 : vector<8x32xf32>
    %265 = arith.addf %263, %264 : vector<8x32xf32>
    %266 = math.tanh %265 : vector<8x32xf32>
    %267 = arith.mulf %261, %266 : vector<8x32xf32>
    %c0_138 = arith.constant 0 : index
    %c0_139 = arith.constant 0 : index
    %268 = vector.load %arg10[%c0_138, %c0_139] : memref<8x32xf32, #tpu.memory_space<vmem>>, vector<8x32xf32>
    tpu.vector_store %arg10[%c0_138, %c0_139], %265 {strides = array<i32>} : memref<8x32xf32, #tpu.memory_space<vmem>>, vector<8x32xf32>,
    %c0_140 = arith.constant 0 : index
    %c0_141 = arith.constant 0 : index
    %269 = vector.load %arg9[%c0_140, %c0_141] : memref<8x128xf32, #tpu.memory_space<vmem>>, vector<8x32xf32>
    tpu.vector_store %arg9[%c0_140, %c0_141], %267 {strides = array<i32>} : memref<8x128xf32, #tpu.memory_space<vmem>>, vector<8x32xf32>,
    %c0_142 = arith.constant 0 : index
    %c0_143 = arith.constant 0 : index
    %270 = vector.load %arg9[%c0_142, %c0_143] : memref<8x128xf32, #tpu.memory_space<vmem>>, vector<8x128xf32>
    %271 = arith.index_cast %c5_i32 : i32 to index
    %c0_144 = arith.constant 0 : index
    %c0_145 = arith.constant 0 : index
    %272 = vector.load %arg8[%271, %c0_144, %c0_145] : memref<8x8x128xf32, #tpu.memory_space<vmem>>, vector<1x8x128xf32>
    %273 = vector.shape_cast %272 : vector<1x8x128xf32> to vector<8x128xf32>
    %274 = vector.shape_cast %270 : vector<8x128xf32> to vector<1x8x128xf32>
    tpu.vector_store %arg8[%271, %c0_144, %c0_145], %274 {strides = array<i32>} : memref<8x8x128xf32, #tpu.memory_space<vmem>>, vector<1x8x128xf32>,
    %c6_i32 = arith.constant 6 : i32
    %c0_146 = arith.constant 0 : index
    %c0_147 = arith.constant 0 : index
    %275 = vector.load %arg9[%c0_146, %c0_147] : memref<8x128xf32, #tpu.memory_space<vmem>>, vector<8x128xf32>
    %276 = arith.truncf %275 : vector<8x128xf32> to vector<8x128xbf16>
    %277 = arith.index_cast %c6_i32 : i32 to index
    %c0_148 = arith.constant 0 : index
    %c0_149 = arith.constant 0 : index
    %278 = vector.load %arg7[%277, %c0_148, %c0_149] : memref<8x8x128xf32, #tpu.memory_space<vmem>>, vector<1x8x128xf32>
    %279 = vector.shape_cast %278 : vector<1x8x128xf32> to vector<8x128xf32>
    %c0_150 = arith.constant 0 : index
    %c0_151 = arith.constant 0 : index
    %c0_152 = arith.constant 0 : index
    %280 = vector.load %arg4[%c0_150, %c0_151, %c0_152] : memref<1x128x128xbf16, #tpu.memory_space<vmem>>, vector<1x128x128xbf16>
    %281 = vector.shape_cast %280 : vector<1x128x128xbf16> to vector<128x128xbf16>
    %cst_153 = arith.constant dense<0.000000e+00> : vector<8x128xf32>
    %282 = tpu.matmul %276, %281, %cst_153 {dimension_numbers = #tpu.dot_dimension_numbers<[1], [0], [0], [1], [0, 0, 1, 1], [], []>} : vector<8x128xbf16>, vector<128x128xbf16>, vector<8x128xf32> -> vector<8x128xf32>
    %283 = arith.addf %279, %282 : vector<8x128xf32>
    %284 = vector.extract_strided_slice %283 {offsets = [0, 0], sizes = [8, 32], strides = [1, 1]} : vector<8x128xf32> to vector<8x32xf32>
    %285 = arith.negf %284 : vector<8x32xf32>
    %286 = math.exp %285 : vector<8x32xf32>
    %cst_154 = arith.constant 1.000000e+00 : f32
    %287 = vector.broadcast %cst_154 : f32 to vector<8x32xf32>
    %288 = arith.addf %287, %286 : vector<8x32xf32>
    %289 = arith.divf %287, %288 : vector<8x32xf32>
    %c96_i32_155 = arith.constant 96 : i32
    %290 = tpu.dynamic_rotate %283 by %c96_i32_155 dim 1 : vector<8x128xf32>, i32 -> vector<8x128xf32>
    %291 = vector.extract_strided_slice %290 {offsets = [0, 0], sizes = [8, 32], strides = [1, 1]} : vector<8x128xf32> to vector<8x32xf32>
    %292 = arith.negf %291 : vector<8x32xf32>
    %293 = math.exp %292 : vector<8x32xf32>
    %cst_156 = arith.constant 1.000000e+00 : f32
    %294 = vector.broadcast %cst_156 : f32 to vector<8x32xf32>
    %295 = arith.addf %294, %293 : vector<8x32xf32>
    %296 = arith.divf %294, %295 : vector<8x32xf32>
    %c64_i32_157 = arith.constant 64 : i32
    %297 = tpu.dynamic_rotate %283 by %c64_i32_157 dim 1 : vector<8x128xf32>, i32 -> vector<8x128xf32>
    %298 = vector.extract_strided_slice %297 {offsets = [0, 0], sizes = [8, 32], strides = [1, 1]} : vector<8x128xf32> to vector<8x32xf32>
    %299 = math.tanh %298 : vector<8x32xf32>
    %c32_i32_158 = arith.constant 32 : i32
    %300 = tpu.dynamic_rotate %283 by %c32_i32_158 dim 1 : vector<8x128xf32>, i32 -> vector<8x128xf32>
    %301 = vector.extract_strided_slice %300 {offsets = [0, 0], sizes = [8, 32], strides = [1, 1]} : vector<8x128xf32> to vector<8x32xf32>
    %302 = arith.negf %301 : vector<8x32xf32>
    %303 = math.exp %302 : vector<8x32xf32>
    %cst_159 = arith.constant 1.000000e+00 : f32
    %304 = vector.broadcast %cst_159 : f32 to vector<8x32xf32>
    %305 = arith.addf %304, %303 : vector<8x32xf32>
    %306 = arith.divf %304, %305 : vector<8x32xf32>
    %c0_160 = arith.constant 0 : index
    %c0_161 = arith.constant 0 : index
    %307 = vector.load %arg10[%c0_160, %c0_161] : memref<8x32xf32, #tpu.memory_space<vmem>>, vector<8x32xf32>
    %308 = arith.mulf %296, %307 : vector<8x32xf32>
    %309 = arith.mulf %289, %299 : vector<8x32xf32>
    %310 = arith.addf %308, %309 : vector<8x32xf32>
    %311 = math.tanh %310 : vector<8x32xf32>
    %312 = arith.mulf %306, %311 : vector<8x32xf32>
    %c0_162 = arith.constant 0 : index
    %c0_163 = arith.constant 0 : index
    %313 = vector.load %arg10[%c0_162, %c0_163] : memref<8x32xf32, #tpu.memory_space<vmem>>, vector<8x32xf32>
    tpu.vector_store %arg10[%c0_162, %c0_163], %310 {strides = array<i32>} : memref<8x32xf32, #tpu.memory_space<vmem>>, vector<8x32xf32>,
    %c0_164 = arith.constant 0 : index
    %c0_165 = arith.constant 0 : index
    %314 = vector.load %arg9[%c0_164, %c0_165] : memref<8x128xf32, #tpu.memory_space<vmem>>, vector<8x32xf32>
    tpu.vector_store %arg9[%c0_164, %c0_165], %312 {strides = array<i32>} : memref<8x128xf32, #tpu.memory_space<vmem>>, vector<8x32xf32>,
    %c0_166 = arith.constant 0 : index
    %c0_167 = arith.constant 0 : index
    %315 = vector.load %arg9[%c0_166, %c0_167] : memref<8x128xf32, #tpu.memory_space<vmem>>, vector<8x128xf32>
    %316 = arith.index_cast %c6_i32 : i32 to index
    %c0_168 = arith.constant 0 : index
    %c0_169 = arith.constant 0 : index
    %317 = vector.load %arg8[%316, %c0_168, %c0_169] : memref<8x8x128xf32, #tpu.memory_space<vmem>>, vector<1x8x128xf32>
    %318 = vector.shape_cast %317 : vector<1x8x128xf32> to vector<8x128xf32>
    %319 = vector.shape_cast %315 : vector<8x128xf32> to vector<1x8x128xf32>
    tpu.vector_store %arg8[%316, %c0_168, %c0_169], %319 {strides = array<i32>} : memref<8x8x128xf32, #tpu.memory_space<vmem>>, vector<1x8x128xf32>,
    %c7_i32 = arith.constant 7 : i32
    %c0_170 = arith.constant 0 : index
    %c0_171 = arith.constant 0 : index
    %320 = vector.load %arg9[%c0_170, %c0_171] : memref<8x128xf32, #tpu.memory_space<vmem>>, vector<8x128xf32>
    %321 = arith.truncf %320 : vector<8x128xf32> to vector<8x128xbf16>
    %322 = arith.index_cast %c7_i32 : i32 to index
    %c0_172 = arith.constant 0 : index
    %c0_173 = arith.constant 0 : index
    %323 = vector.load %arg7[%322, %c0_172, %c0_173] : memref<8x8x128xf32, #tpu.memory_space<vmem>>, vector<1x8x128xf32>
    %324 = vector.shape_cast %323 : vector<1x8x128xf32> to vector<8x128xf32>
    %c0_174 = arith.constant 0 : index
    %c0_175 = arith.constant 0 : index
    %c0_176 = arith.constant 0 : index
    %325 = vector.load %arg4[%c0_174, %c0_175, %c0_176] : memref<1x128x128xbf16, #tpu.memory_space<vmem>>, vector<1x128x128xbf16>
    %326 = vector.shape_cast %325 : vector<1x128x128xbf16> to vector<128x128xbf16>
    %cst_177 = arith.constant dense<0.000000e+00> : vector<8x128xf32>
    %327 = tpu.matmul %321, %326, %cst_177 {dimension_numbers = #tpu.dot_dimension_numbers<[1], [0], [0], [1], [0, 0, 1, 1], [], []>} : vector<8x128xbf16>, vector<128x128xbf16>, vector<8x128xf32> -> vector<8x128xf32>
    %328 = arith.addf %324, %327 : vector<8x128xf32>
    %329 = vector.extract_strided_slice %328 {offsets = [0, 0], sizes = [8, 32], strides = [1, 1]} : vector<8x128xf32> to vector<8x32xf32>
    %330 = arith.negf %329 : vector<8x32xf32>
    %331 = math.exp %330 : vector<8x32xf32>
    %cst_178 = arith.constant 1.000000e+00 : f32
    %332 = vector.broadcast %cst_178 : f32 to vector<8x32xf32>
    %333 = arith.addf %332, %331 : vector<8x32xf32>
    %334 = arith.divf %332, %333 : vector<8x32xf32>
    %c96_i32_179 = arith.constant 96 : i32
    %335 = tpu.dynamic_rotate %328 by %c96_i32_179 dim 1 : vector<8x128xf32>, i32 -> vector<8x128xf32>
    %336 = vector.extract_strided_slice %335 {offsets = [0, 0], sizes = [8, 32], strides = [1, 1]} : vector<8x128xf32> to vector<8x32xf32>
    %337 = arith.negf %336 : vector<8x32xf32>
    %338 = math.exp %337 : vector<8x32xf32>
    %cst_180 = arith.constant 1.000000e+00 : f32
    %339 = vector.broadcast %cst_180 : f32 to vector<8x32xf32>
    %340 = arith.addf %339, %338 : vector<8x32xf32>
    %341 = arith.divf %339, %340 : vector<8x32xf32>
    %c64_i32_181 = arith.constant 64 : i32
    %342 = tpu.dynamic_rotate %328 by %c64_i32_181 dim 1 : vector<8x128xf32>, i32 -> vector<8x128xf32>
    %343 = vector.extract_strided_slice %342 {offsets = [0, 0], sizes = [8, 32], strides = [1, 1]} : vector<8x128xf32> to vector<8x32xf32>
    %344 = math.tanh %343 : vector<8x32xf32>
    %c32_i32_182 = arith.constant 32 : i32
    %345 = tpu.dynamic_rotate %328 by %c32_i32_182 dim 1 : vector<8x128xf32>, i32 -> vector<8x128xf32>
    %346 = vector.extract_strided_slice %345 {offsets = [0, 0], sizes = [8, 32], strides = [1, 1]} : vector<8x128xf32> to vector<8x32xf32>
    %347 = arith.negf %346 : vector<8x32xf32>
    %348 = math.exp %347 : vector<8x32xf32>
    %cst_183 = arith.constant 1.000000e+00 : f32
    %349 = vector.broadcast %cst_183 : f32 to vector<8x32xf32>
    %350 = arith.addf %349, %348 : vector<8x32xf32>
    %351 = arith.divf %349, %350 : vector<8x32xf32>
    %c0_184 = arith.constant 0 : index
    %c0_185 = arith.constant 0 : index
    %352 = vector.load %arg10[%c0_184, %c0_185] : memref<8x32xf32, #tpu.memory_space<vmem>>, vector<8x32xf32>
    %353 = arith.mulf %341, %352 : vector<8x32xf32>
    %354 = arith.mulf %334, %344 : vector<8x32xf32>
    %355 = arith.addf %353, %354 : vector<8x32xf32>
    %356 = math.tanh %355 : vector<8x32xf32>
    %357 = arith.mulf %351, %356 : vector<8x32xf32>
    %c0_186 = arith.constant 0 : index
    %c0_187 = arith.constant 0 : index
    %358 = vector.load %arg10[%c0_186, %c0_187] : memref<8x32xf32, #tpu.memory_space<vmem>>, vector<8x32xf32>
    tpu.vector_store %arg10[%c0_186, %c0_187], %355 {strides = array<i32>} : memref<8x32xf32, #tpu.memory_space<vmem>>, vector<8x32xf32>,
    %c0_188 = arith.constant 0 : index
    %c0_189 = arith.constant 0 : index
    %359 = vector.load %arg9[%c0_188, %c0_189] : memref<8x128xf32, #tpu.memory_space<vmem>>, vector<8x32xf32>
    tpu.vector_store %arg9[%c0_188, %c0_189], %357 {strides = array<i32>} : memref<8x128xf32, #tpu.memory_space<vmem>>, vector<8x32xf32>,
    %c0_190 = arith.constant 0 : index
    %c0_191 = arith.constant 0 : index
    %360 = vector.load %arg9[%c0_190, %c0_191] : memref<8x128xf32, #tpu.memory_space<vmem>>, vector<8x128xf32>
    %361 = arith.index_cast %c7_i32 : i32 to index
    %c0_192 = arith.constant 0 : index
    %c0_193 = arith.constant 0 : index
    %362 = vector.load %arg8[%361, %c0_192, %c0_193] : memref<8x8x128xf32, #tpu.memory_space<vmem>>, vector<1x8x128xf32>
    %363 = vector.shape_cast %362 : vector<1x8x128xf32> to vector<8x128xf32>
    %364 = vector.shape_cast %360 : vector<8x128xf32> to vector<1x8x128xf32>
    tpu.vector_store %arg8[%361, %c0_192, %c0_193], %364 {strides = array<i32>} : memref<8x8x128xf32, #tpu.memory_space<vmem>>, vector<1x8x128xf32>,
    %c7_i32_194 = arith.constant 7 : i32
    %c1_i32_195 = arith.constant 1 : i32
    %365 = arith.cmpi eq, %arg1, %c1_i32_195 : i32
    %366 = arith.extui %365 : i1 to i32
    %c0_i32_196 = arith.constant 0 : i32
    %367 = arith.cmpi ne, %366, %c0_i32_196 : i32
    scf.if %367 {
      %c0_197 = arith.constant 0 : index
      %c0_198 = arith.constant 0 : index
      %368 = vector.load %arg9[%c0_197, %c0_198] : memref<8x128xf32, #tpu.memory_space<vmem>>, vector<8x128xf32>
      %c0_199 = arith.constant 0 : index
      %c0_200 = arith.constant 0 : index
      %369 = vector.load %arg6[%c0_199, %c0_200] : memref<8x128xf32, #tpu.memory_space<vmem>>, vector<8x128xf32>
      tpu.vector_store %arg6[%c0_199, %c0_200], %368 {strides = array<i32>} : memref<8x128xf32, #tpu.memory_space<vmem>>, vector<8x128xf32>,
    } else {
    }
    return
  }
  func.func @transform_1(%arg0: i32, %arg1: i32) -> (i32, i32, i32) {
    %c0_i32 = arith.constant 0 : i32
    %c0_i32_0 = arith.constant 0 : i32
    %c0_i32_1 = arith.constant 0 : i32
    return %arg1, %c0_i32, %c0_i32_0 : i32, i32, i32
  }
  func.func @transform_2(%arg0: i32, %arg1: i32) -> (i32, i32, i32) {
    %c0_i32 = arith.constant 0 : i32
    %c0_i32_0 = arith.constant 0 : i32
    %c0_i32_1 = arith.constant 0 : i32
    return %arg1, %c0_i32, %c0_i32_0 : i32, i32, i32
  }
  func.func @transform_3(%arg0: i32, %arg1: i32) -> (i32, i32, i32) {
    %c0_i32 = arith.constant 0 : i32
    %c0_i32_0 = arith.constant 0 : i32
    %c0_i32_1 = arith.constant 0 : i32
    return %arg1, %c0_i32, %c0_i32_0 : i32, i32, i32
  }
  func.func @transform_4(%arg0: i32, %arg1: i32) -> (i32, i32) {
    %c0_i32 = arith.constant 0 : i32
    %c0_i32_0 = arith.constant 0 : i32
    return %arg0, %c0_i32 : i32, i32
  }
}

</mosaic_0001>

<llo_original>
// kernel: tpu_custom_call.1
$region0: #{tpu_custom_call.1}
  #allocation0 [shape = 'u32[]', space=smem, size = 0x4, offset = 0x4, fixed_abs, tag = 'smem constant byte address 0x4 - core index']
  #allocation1 [shape = 'u32[144,128]{1,0:T(1,128)}', space=vmem, size = 0x12000, scoped, tag = 'internal scratch']
  #allocation2 [shape = 'f32[8,8,128]{2,1,0:T(8,128)}', space=vmem, size = 0x8000, scoped, tag = 'scratch operand']
  #allocation3 [shape = 'f32[8,8,128]{2,1,0:T(8,128)}', space=vmem, size = 0x8000, scoped, tag = 'scratch operand']
  #allocation4 [shape = 'f32[8,128]{1,0:T(8,128)}', space=vmem, size = 0x1000, scoped, tag = 'scratch operand']
  #allocation5 [shape = 'f32[8,32]{1,0:T(8,128)}', space=vmem, size = 0x1000, scoped, tag = 'scratch operand']
  #allocation6 [shape = 's32[1]{0}', space=sflag, size = 0x4, scoped, tag = 'scratch operand']
  #allocation13 [shape = 's32[]', space=sflag, size = 0x4, offset = 0, fixed_abs, tag = 'sflag constant byte address 0x0 - dummy sync flag']
  #allocation14 [shape = 's32[]', space=sflag, size = 0x4, offset = 0, fixed_abs, tag = 'sflag constant byte address 0x0 - dummy sync flag']
  #allocation15 [shape = 'u32[]', space=smem, size = 0x4, offset = 0x44, fixed_abs, tag = 'smem constant byte address 0x44 - assertion arg 0']
  #allocation16 [shape = 'u32[]', space=smem, size = 0x4, offset = 0x48, fixed_abs, tag = 'smem constant byte address 0x48 - assertion arg 1']
  %s0 = inlined_call_operand.hbm [shape: f32[1,8,8,128], index: 0, kind: input, shape index: {}]
  %s1 = inlined_call_operand.hbm [shape: bf16[2,128,128], index: 1, kind: input, shape index: {}]
  %s2 = inlined_call_operand.hbm [shape: bf16[2,128,128], index: 2, kind: input, shape index: {}]
  %s3 = inlined_call_operand.vmem [shape: f32[2,1,128], index: 3, kind: input, shape index: {}]
  %s4 = inlined_call_operand.hbm [shape: f32[8,128], index: 4, kind: output, shape index: {}]
  %s5 = sld [smem:[#allocation0]]
  $region73: #{tpu_custom_call.1} parent=0
    _
  %s7 = ssub.s32 1, %s5
  %s8 = scalar_select 0, %s7, %s5
  $region1: #{tpu_custom_call.1} parent=0
    #allocation7 [shape = 'u8[65536]{0}', space=vmem, size = 0x10000, scoped, tag = 'input window, operand 1']
    #allocation8 [shape = 's32[2]{0}', space=sflag, size = 0x8, scoped, tag = 'scoped memory for tpu_custom_call.1']
    #allocation9 [shape = 's32[2]{0}', space=sflag, size = 0x8, scoped, tag = 'scoped memory for tpu_custom_call.1']
    #allocation10 [shape = 'u8[65536]{0}', space=vmem, size = 0x10000, scoped, tag = 'input window, operand 2']
    #allocation11 [shape = 's32[2]{0}', space=sflag, size = 0x8, scoped, tag = 'scoped memory for tpu_custom_call.1']
    #allocation12 [shape = 'u8[4096]{0}', space=vmem, size = 0x1000, scoped, tag = 'output window, operand 0, single buffered']
    %9 = vsyncpa [#allocation8], 0
    %s10 = scalar_lea.sflag [#allocation8], 1
    %11 = vsyncpa %s10, 0
    %12 = vsyncpa [#allocation11], 0
    %s13 = scalar_lea.sflag [#allocation11], 1
    %14 = vsyncpa %s13, 0
    %15 = vsyncpa [#allocation9], 0
    loop: start=0, step=1, limit=4
    $region2: #{tpu_custom_call.1} parent=1 // loop_pre_header
      _
    $region3: #{tpu_custom_call.1} parent=1 // loop_header
      %s17 = sphi 0, %s21
      %p18 = scmp.ge.s32.totalorder %s17, 4
      %s24 = sphi 0, %s36
      %s25 = sphi 0, %s32
      %s26 = sphi 0, %s24
      %s27 = sphi 0, %s25
      %s28 = sphi 0, %s26
      %s29 = sphi 0, %s27
      %s39 = sphi 0, %s41
      %s42 = sphi 0, %s39
      %s43 = sphi 0, %s42
      %s59 = sphi 0, %s43
      %s65 = sphi 0, %s67
      %s68 = sphi 0, %s65
      %s69 = sphi 0, %s68
      %s85 = sphi 0, %s69
      %s91 = sphi 0, %s93
      %s94 = sphi 0, %s91
      %s95 = sphi 0, %s94
      %s111 = sphi 0, %s95
      %s117 = sphi 0, %s119
      %s120 = sphi 0, %s117
      %s121 = sphi 0, %s120
      %s137 = sphi 0, %s121
    $region4: #{tpu_custom_call.1} parent=1 // loop_header_branch
      %20 = sbr.rel (%p18) target = $region8
    $region5: #{tpu_custom_call.1} parent=1 // loop_body
      %s22 = ssub.s32 %s17, 1
      %s23 = ssub.s32 %s17, 2
      %s30 = sadd.s32 1, %s25
      %p31 = scmp.ge.s32.totalorder %s30, 2
      %s32 = scalar_select %p31, 0, %s30
      %s33 = sadd.s32 1, %s24
      %s34 = scalar_select %p31, %s33, %s24
      %p35 = scmp.ge.s32.totalorder %s34, 1
      %s36 = scalar_select %p35, 0, %s34
      %s37 = ssub.s32 %s25, %s32
      %p38 = scmp.eq.s32.totalorder %s37, 0
      %s40 = sadd.s32 %s39, 1
      %s41 = scalar_select %p38, %s39, %s40
      %p44 = pneg %p38
      %p45 = scmp.eq.s32.totalorder %s17, 1
      %p46 = por %p44, %p45
      %p47 = scmp.ne.s32.totalorder %s39, %s42
      %p48 = scmp.eq.s32.totalorder %s17, 0
      %p49 = por %p47, %p48
      %p50 = scmp.ne.s32.totalorder %s39, %s42
      %p51 = scmp.eq.s32.totalorder %s22, 1
      %p52 = por %p50, %p51
      %p53 = scmp.ne.s32.totalorder %s42, %s43
      %p54 = scmp.eq.s32.totalorder %s22, 0
      %p55 = por %p53, %p54
      %p56 = scmp.ne.s32.totalorder %s42, %s43
      %p57 = scmp.eq.s32.totalorder %s23, 1
      %p58 = por %p56, %p57
      %p60 = scmp.ne.s32.totalorder %s43, %s59
      %p61 = scmp.eq.s32.totalorder %s23, 0
      %p62 = por %p60, %p61
      %s63 = ssub.s32 %s25, %s32
      %p64 = scmp.eq.s32.totalorder %s63, 0
      %s66 = sadd.s32 %s65, 1
      %s67 = scalar_select %p64, %s65, %s66
      %p70 = pneg %p64
      %p71 = scmp.eq.s32.totalorder %s17, 1
      %p72 = por %p70, %p71
      %p73 = scmp.ne.s32.totalorder %s65, %s68
      %p74 = scmp.eq.s32.totalorder %s17, 0
      %p75 = por %p73, %p74
      %p76 = scmp.ne.s32.totalorder %s65, %s68
      %p77 = scmp.eq.s32.totalorder %s22, 1
      %p78 = por %p76, %p77
      %p79 = scmp.ne.s32.totalorder %s68, %s69
      %p80 = scmp.eq.s32.totalorder %s22, 0
      %p81 = por %p79, %p80
      %p82 = scmp.ne.s32.totalorder %s68, %s69
      %p83 = scmp.eq.s32.totalorder %s23, 1
      %p84 = por %p82, %p83
      %p86 = scmp.ne.s32.totalorder %s69, %s85
      %p87 = scmp.eq.s32.totalorder %s23, 0
      %p88 = por %p86, %p87
      %s89 = ssub.s32 %s25, %s32
      %p90 = scmp.eq.s32.totalorder %s89, 0
      %s92 = sadd.s32 %s91, 1
      %s93 = scalar_select %p90, %s91, %s92
      %p96 = pneg %p90
      %p97 = scmp.eq.s32.totalorder %s17, 1
      %p98 = por %p96, %p97
      %p99 = scmp.ne.s32.totalorder %s91, %s94
      %p100 = scmp.eq.s32.totalorder %s17, 0
      %p101 = por %p99, %p100
      %p102 = scmp.ne.s32.totalorder %s91, %s94
      %p103 = scmp.eq.s32.totalorder %s22, 1
      %p104 = por %p102, %p103
      %p105 = scmp.ne.s32.totalorder %s94, %s95
      %p106 = scmp.eq.s32.totalorder %s22, 0
      %p107 = por %p105, %p106
      %p108 = scmp.ne.s32.totalorder %s94, %s95
      %p109 = scmp.eq.s32.totalorder %s23, 1
      %p110 = por %p108, %p109
      %p112 = scmp.ne.s32.totalorder %s95, %s111
      %p113 = scmp.eq.s32.totalorder %s23, 0
      %p114 = por %p112, %p113
      %s115 = ssub.s32 %s24, %s36
      %p116 = scmp.eq.s32.totalorder %s115, 0
      %s118 = sadd.s32 %s117, 1
      %s119 = scalar_select %p116, %s117, %s118
      %p122 = pneg %p116
      %p123 = scmp.eq.s32.totalorder %s17, 1
      %p124 = por %p122, %p123
      %p125 = scmp.ne.s32.totalorder %s117, %s120
      %p126 = scmp.eq.s32.totalorder %s17, 0
      %p127 = por %p125, %p126
      %p128 = scmp.ne.s32.totalorder %s117, %s120
      %p129 = scmp.eq.s32.totalorder %s22, 1
      %p130 = por %p128, %p129
      %p131 = scmp.ne.s32.totalorder %s120, %s121
      %p132 = scmp.eq.s32.totalorder %s22, 0
      %p133 = por %p131, %p132
      %p134 = scmp.ne.s32.totalorder %s120, %s121
      %p135 = scmp.eq.s32.totalorder %s23, 1
      %p136 = por %p134, %p135
      %p138 = scmp.ne.s32.totalorder %s121, %s137
      %p139 = scmp.eq.s32.totalorder %s23, 0
      %p140 = por %p138, %p139
      %p141 = scmp.le.s32.totalorder 1, %s17
      %p142 = scmp.lt.s32.totalorder %s17, 3
      %p143 = pnand %p141, %p142
      %p144 = pneg %p143
      // Predicated region
      $region9: #{tpu_custom_call.1} parent=5 // pred_check
        _
      $region10: #{tpu_custom_call.1} parent=5 // pred_check_branch
        %146 = sbr.rel (%p143) target = $region12
      $region11: #{tpu_custom_call.1} parent=5 // pred_region
        %s147 = ssub.s32 %s17, 1
      $region12: #{tpu_custom_call.1} parent=5 // pred_fallthru
        _
      %p148 = scmp.lt.s32.totalorder %s17, 2
      // Predicated region
      $region13: #{tpu_custom_call.1} parent=5 // pred_check
        %p149 = pneg %p148
      $region14: #{tpu_custom_call.1} parent=5 // pred_check_branch
        %151 = sbr.rel (%p149) target = $region16
      $region15: #{tpu_custom_call.1} parent=5 // pred_region
        // Predicated region
        $region17: #{tpu_custom_call.1} parent=15 // pred_check
          %p152 = pneg %p49
        $region18: #{tpu_custom_call.1} parent=15 // pred_check_branch
          %154 = sbr.rel (%p152) target = $region20
        $region19: #{tpu_custom_call.1} parent=15 // pred_region
          %s155 = sand.u32 %s39, 1
          %s156 = scalar_lea.sflag [#allocation8], %s155
          %s157 = sand.u32 %s39, 1
          %s158 = smul.addr %s157, 64
          %s159 = scalar_lea.vmem [#allocation7], %s158
          %s161 = ssub.s32 1024, 1024
          %162 = vsyncadd %s156, %s161
          %s163 = smul.addr %s25, 16
          %s164 = smul.addr %s163, 64
          %s165 = scalar_lea.hbm %s1, %s164
          %s166 = sshll.u32 %s159, 4
          %s167 = int_to_ptr.vmem [resolvable:$true] %s166
          %172 = dma.hbm_to_vmem [thread:$0]  %s165, 1024, %s167, %s156, 64, 64, 4
        $region20: #{tpu_custom_call.1} parent=15 // pred_fallthru
          _
        // Predicated region
        $region21: #{tpu_custom_call.1} parent=15 // pred_check
          %p173 = pneg %p75
        $region22: #{tpu_custom_call.1} parent=15 // pred_check_branch
          %175 = sbr.rel (%p173) target = $region24
        $region23: #{tpu_custom_call.1} parent=15 // pred_region
          %s176 = sand.u32 %s65, 1
          %s177 = scalar_lea.sflag [#allocation11], %s176
          %s178 = sand.u32 %s65, 1
          %s179 = smul.addr %s178, 64
          %s180 = scalar_lea.vmem [#allocation10], %s179
          %s182 = ssub.s32 1024, 1024
          %183 = vsyncadd %s177, %s182
          %s184 = smul.addr %s25, 16
          %s185 = smul.addr %s184, 64
          %s186 = scalar_lea.hbm %s2, %s185
          %s187 = sshll.u32 %s180, 4
          %s188 = int_to_ptr.vmem [resolvable:$true] %s187
          %193 = dma.hbm_to_vmem [thread:$0]  %s186, 1024, %s188, %s177, 64, 64, 4
        $region24: #{tpu_custom_call.1} parent=15 // pred_fallthru
          _
        // Predicated region
        $region25: #{tpu_custom_call.1} parent=15 // pred_check
          %p194 = pneg %p101
        $region26: #{tpu_custom_call.1} parent=15 // pred_check_branch
          %196 = sbr.rel (%p194) target = $region28
        $region27: #{tpu_custom_call.1} parent=15 // pred_region
          %p197 = scmp.lt.s32.totalorder %s25, 1
          %s198 = scalar_select %p197, %s25, 1
          %s199 = scalar_lea.vmem %s3, %s198
        $region28: #{tpu_custom_call.1} parent=15 // pred_fallthru
          _
      $region16: #{tpu_custom_call.1} parent=5 // pred_fallthru
        _
      %p200 = scmp.le.s32.totalorder 1, %s17
      %p201 = scmp.lt.s32.totalorder %s17, 3
      %p202 = pnand %p200, %p201
      %p203 = pneg %p202
      // Predicated region
      $region29: #{tpu_custom_call.1} parent=5 // pred_check
        _
      $region30: #{tpu_custom_call.1} parent=5 // pred_check_branch
        %205 = sbr.rel (%p202) target = $region32
      $region31: #{tpu_custom_call.1} parent=5 // pred_region
        %s206 = ssub.s32 %s17, 1
        %s207 = sand.u32 %s42, 1
        %s208 = scalar_lea.sflag [#allocation8], %s207
        %s209 = sand.u32 %s42, 1
        %s210 = smul.addr %s209, 64
        %s211 = scalar_lea.vmem [#allocation7], %s210
        // Predicated region
        $region33: #{tpu_custom_call.1} parent=31 // pred_check
          %p212 = pneg %p55
        $region34: #{tpu_custom_call.1} parent=31 // pred_check_branch
          %214 = sbr.rel (%p212) target = $region36
        $region35: #{tpu_custom_call.1} parent=31 // pred_region
          %215 = dma.done %s208, 1024
        $region36: #{tpu_custom_call.1} parent=31 // pred_fallthru
          _
        %s216 = sand.u32 %s68, 1
        %s217 = scalar_lea.sflag [#allocation11], %s216
        %s218 = sand.u32 %s68, 1
        %s219 = smul.addr %s218, 64
        %s220 = scalar_lea.vmem [#allocation10], %s219
        // Predicated region
        $region37: #{tpu_custom_call.1} parent=31 // pred_check
          %p221 = pneg %p81
        $region38: #{tpu_custom_call.1} parent=31 // pred_check_branch
          %223 = sbr.rel (%p221) target = $region40
        $region39: #{tpu_custom_call.1} parent=31 // pred_region
          %224 = dma.done %s217, 1024
        $region40: #{tpu_custom_call.1} parent=31 // pred_fallthru
          _
        %s225 = sand.u32 %s42, 1
        %s226 = scalar_lea.sflag [#allocation8], %s225
        %s227 = sand.u32 %s42, 1
        %s228 = smul.addr %s227, 64
        %s229 = scalar_lea.vmem [#allocation7], %s228
        %p230 = pneg %p55
        %p231 = pneg %p52
        %s232 = sand.u32 %s68, 1
        %s233 = scalar_lea.sflag [#allocation11], %s232
        %s234 = sand.u32 %s68, 1
        %s235 = smul.addr %s234, 64
        %s236 = scalar_lea.vmem [#allocation10], %s235
        %p237 = pneg %p81
        %p238 = pneg %p78
        %p239 = scmp.lt.s32.totalorder %s27, 1
        %s240 = scalar_select %p239, %s27, 1
        %s241 = scalar_lea.vmem %s3, %s240
        %p242 = pneg %p107
        %p243 = pneg %p104
        %p244 = pneg %p133
        %p245 = pneg %p130
        %p246 = scmp.lt.s32.totalorder %s27, 1
        %s247 = scalar_select %p246, %s27, 1
        %s248 = scalar_lea.vmem %s3, %s247
        %p250 = scmp.eq.s32.totalorder %s27, 0
        // Predicated region
        $region41: #{tpu_custom_call.1} parent=31 // pred_check
          %p251 = pneg %p250
        $region42: #{tpu_custom_call.1} parent=31 // pred_check_branch
          %253 = sbr.rel (%p251) target = $region44
        $region43: #{tpu_custom_call.1} parent=31 // pred_region
          %s254 = smul.u32 %s26, 64
          %s255 = smul.addr %s254, 16
          %s256 = scalar_lea.hbm %s0, %s255
          // Predicated region
          $region45: #{tpu_custom_call.1} parent=43 // pred_check
            _
          $region46: #{tpu_custom_call.1} parent=43 // pred_check_branch
            %258 = sbr.rel target = $region48
          $region47: #{tpu_custom_call.1} parent=43 // pred_region
            %259 = sst [smem:[#allocation15]] [#allocation14]
            %260 = sst [smem:[#allocation16]] [#allocation13]
          $region48: #{tpu_custom_call.1} parent=43 // pred_fallthru
            _
          %262 = shalt.err (0)
          %s264 = sshll.u32 [#allocation2], 4
          %s265 = int_to_ptr.vmem [resolvable:$true] %s264
          %267 = dma.hbm_to_vmem [thread:$0]  %s256, 1024, %s265, [#allocation6]
        $region44: #{tpu_custom_call.1} parent=31 // pred_fallthru
          _
        %p268 = scmp.gt.s32.totalorder %s27, 0
        // Predicated region
        $region49: #{tpu_custom_call.1} parent=31 // pred_check
          %p269 = pneg %p268
        $region50: #{tpu_custom_call.1} parent=31 // pred_check_branch
          %271 = sbr.rel (%p269) target = $region52
        $region51: #{tpu_custom_call.1} parent=31 // pred_region
          %v272 = vld [vmem:[#allocation3] sm:$0xff]
          %v273 = vld [vmem:[#allocation3 + $0x8] sm:$0xff]
          %v274 = vld [vmem:[#allocation3 + $0x10] sm:$0xff]
          %v275 = vld [vmem:[#allocation3 + $0x18] sm:$0xff]
          %v276 = vld [vmem:[#allocation3 + $0x20] sm:$0xff]
          %v277 = vld [vmem:[#allocation3 + $0x28] sm:$0xff]
          %v278 = vld [vmem:[#allocation3 + $0x30] sm:$0xff]
          %v279 = vld [vmem:[#allocation3 + $0x38] sm:$0xff]
          %v280 = vpack.c.bf16 %v273, %v272
          %v281 = vpack.c.bf16 %v275, %v274
          %v282 = vpack.c.bf16 %v277, %v276
          %v283 = vpack.c.bf16 %v279, %v278
          %v284 = vld [vmem:[%s211] sm:$0xf]
          %v285 = vld [vmem:[%s211 + $0x4] sm:$0xf]
          %v286 = vld [vmem:[%s211 + $0x8] sm:$0xf]
          %v287 = vld [vmem:[%s211 + $0xc] sm:$0xf]
          %v288 = vld [vmem:[%s211 + $0x10] sm:$0xf]
          %v289 = vld [vmem:[%s211 + $0x14] sm:$0xf]
          %v290 = vld [vmem:[%s211 + $0x18] sm:$0xf]
          %v291 = vld [vmem:[%s211 + $0x1c] sm:$0xf]
          %v292 = vld [vmem:[%s211 + $0x20] sm:$0xf]
          %v293 = vld [vmem:[%s211 + $0x24] sm:$0xf]
          %v294 = vld [vmem:[%s211 + $0x28] sm:$0xf]
          %v295 = vld [vmem:[%s211 + $0x2c] sm:$0xf]
          %v296 = vld [vmem:[%s211 + $0x30] sm:$0xf]
          %v297 = vld [vmem:[%s211 + $0x34] sm:$0xf]
          %v298 = vld [vmem:[%s211 + $0x38] sm:$0xf]
          %v299 = vld [vmem:[%s211 + $0x3c] sm:$0xf]
          %v300 = vld [vmem:[%s248] sm:$0x1]
          %v302 = vlaneseq
          %v303 = vshrl.u32 %v302, 7
          %v304 = vsub.s32 0, %v303
          %v305 = vrot.slane %v300, %v304
          %v323 = vunpack.c.l.b16 %v284
          %v324 = vunpack.c.l.b16 %v285
          %v325 = vunpack.c.l.b16 %v286
          %v326 = vunpack.c.l.b16 %v287
          %v327 = vunpack.c.l.b16 %v288
          %v328 = vunpack.c.l.b16 %v289
          %v329 = vunpack.c.l.b16 %v290
          %v330 = vunpack.c.l.b16 %v291
          %v331 = vunpack.c.l.b16 %v292
          %v332 = vunpack.c.l.b16 %v293
          %v333 = vunpack.c.l.b16 %v294
          %v334 = vunpack.c.l.b16 %v295
          %v335 = vunpack.c.l.b16 %v296
          %v336 = vunpack.c.l.b16 %v297
          %v337 = vunpack.c.l.b16 %v298
          %v338 = vunpack.c.l.b16 %v299
          %v339 = vpack.c.b16 %v324, %v323
          %v340 = vpack.c.b16 %v326, %v325
          %v341 = vpack.c.b16 %v328, %v327
          %v342 = vpack.c.b16 %v330, %v329
          %v343 = vpack.c.b16 %v332, %v331
          %v344 = vpack.c.b16 %v334, %v333
          %v345 = vpack.c.b16 %v336, %v335
          %v346 = vpack.c.b16 %v338, %v337
          %355 = vmatprep.subr.bf16.mxu0 0
          %356 = vmatpush1.bf16.msra.mxu0 %v339
          %357 = vmatprep.subr.bf16.mxu0 0
          %358 = vmatpush1.bf16.msra.mxu0 %v340
          %359 = vmatprep.subr.bf16.mxu0 0
          %360 = vmatpush1.bf16.msra.mxu0 %v341
          %361 = vmatprep.subr.bf16.mxu0 0
          %362 = vmatpush1.bf16.msra.mxu0 %v342
          %363 = vmatprep.subr.bf16.mxu0 0
          %364 = vmatpush1.bf16.msra.mxu0 %v343
          %365 = vmatprep.subr.bf16.mxu0 0
          %366 = vmatpush1.bf16.msra.mxu0 %v344
          %367 = vmatprep.subr.bf16.mxu0 0
          %368 = vmatpush1.bf16.msra.mxu0 %v345
          %369 = vmatprep.subr.bf16.mxu0 0
          %370 = vmatpush1.bf16.msra.mxu0 %v346
          %371 = vmatprep.subr.bf16.mxu0 0
          %372 = vmatpush1.bf16.msra.mxu0 0
          %373 = vmatprep.subr.bf16.mxu0 0
          %374 = vmatpush1.bf16.msra.mxu0 0
          %375 = vmatprep.subr.bf16.mxu0 0
          %376 = vmatpush1.bf16.msra.mxu0 0
          %377 = vmatprep.subr.bf16.mxu0 0
          %378 = vmatpush1.bf16.msra.mxu0 0
          %379 = vmatprep.subr.bf16.mxu0 0
          %380 = vmatpush1.bf16.msra.mxu0 0
          %381 = vmatprep.subr.bf16.mxu0 0
          %382 = vmatpush1.bf16.msra.mxu0 0
          %383 = vmatprep.subr.bf16.mxu0 0
          %384 = vmatpush1.bf16.msra.mxu0 0
          %385 = vmatprep.subr.bf16.mxu0 0
          %386 = vmatpush1.bf16.msra.mxu0 0
          %387 = vmatprep.mubr.bf16.mxu0 0
          %388 = vmatmul.mubr.bf16.gmra.mrb[0].mxu0 %v280
          %v389 = vpop.f32.mrb[0].mxu0
          %v390 = vadd.f32 %v305, %v389
          %v391 = vpop.f32.mrb[0].mxu0
          %v392 = vpop.f32.mrb[0].mxu0
          %v393 = vadd.f32 %v305, %v392
          %v394 = vpop.f32.mrb[0].mxu0
          %395 = vmatprep.mubr.bf16.mxu0 0
          %396 = vmatmul.mubr.bf16.gmra.mrb[0].mxu0 %v281
          %v397 = vpop.f32.mrb[0].mxu0
          %v398 = vadd.f32 %v305, %v397
          %v399 = vpop.f32.mrb[0].mxu0
          %v400 = vpop.f32.mrb[0].mxu0
          %v401 = vadd.f32 %v305, %v400
          %v402 = vpop.f32.mrb[0].mxu0
          %403 = vmatprep.mubr.bf16.mxu0 0
          %404 = vmatmul.mubr.bf16.gmra.mrb[0].mxu0 %v282
          %v405 = vpop.f32.mrb[0].mxu0
          %v406 = vadd.f32 %v305, %v405
          %v407 = vpop.f32.mrb[0].mxu0
          %v408 = vpop.f32.mrb[0].mxu0
          %v409 = vadd.f32 %v305, %v408
          %v410 = vpop.f32.mrb[0].mxu0
          %411 = vmatprep.mubr.bf16.mxu0 0
          %412 = vmatmul.mubr.bf16.gmra.mrb[0].mxu0 %v283
          %v413 = vpop.f32.mrb[0].mxu0
          %v414 = vadd.f32 %v305, %v413
          %v415 = vpop.f32.mrb[0].mxu0
          %v416 = vpop.f32.mrb[0].mxu0
          %v417 = vadd.f32 %v305, %v416
          %v418 = vpop.f32.mrb[0].mxu0
          %419 = vdwg.mxu0
          %420 = vst [vmem:[#allocation2] sm:$0xff] %v390
          %421 = vst [vmem:[#allocation2 + $0x8] sm:$0xff] %v393
          %422 = vst [vmem:[#allocation2 + $0x10] sm:$0xff] %v398
          %423 = vst [vmem:[#allocation2 + $0x18] sm:$0xff] %v401
          %424 = vst [vmem:[#allocation2 + $0x20] sm:$0xff] %v406
          %425 = vst [vmem:[#allocation2 + $0x28] sm:$0xff] %v409
          %426 = vst [vmem:[#allocation2 + $0x30] sm:$0xff] %v414
          %427 = vst [vmem:[#allocation2 + $0x38] sm:$0xff] %v417
        $region52: #{tpu_custom_call.1} parent=31 // pred_fallthru
          _
        %428 = vst [vmem:[#allocation4] sm:$0xff] 0.0
        %vm429 = vcmask 261120
        %430 = vst.msk [vmem:[#allocation5] sm:$0xff] %vm429, 0.0
        // Predicated region
        $region53: #{tpu_custom_call.1} parent=31 // pred_check
          %p431 = pneg %p250
        $region54: #{tpu_custom_call.1} parent=31 // pred_check_branch
          %433 = sbr.rel (%p431) target = $region56
        $region55: #{tpu_custom_call.1} parent=31 // pred_region
          %s434 = smul.u32 8, 8
          %s435 = smul.u32 %s434, 1
          %s436 = sshll.u32 %s435, 4
          %437 = dma.done [#allocation6], %s436
        $region56: #{tpu_custom_call.1} parent=31 // pred_fallthru
          _
        %v438 = vld [vmem:[#allocation2] sm:$0xff]
        %v439 = vxor.u32 %v438, 2147483648
        %v440 = vmul.f32 %v439, 1.442695
        %v441 = vpow.pop %v440
        %v442 = vadd.f32 %v441, 1.0
        %v443 = vrcp.pop %v442
        %v444 = vmul.f32 1.0, %v443
        %445 = vrot.lane.b32.xlu0 %v438, 96
        %v446 = vpop.permute.xlu0 %445
        %v447 = vxor.u32 %v446, 2147483648
        %v448 = vmul.f32 %v447, 1.442695
        %v449 = vpow.pop %v448
        %v450 = vadd.f32 %v449, 1.0
        %v451 = vrcp.pop %v450
        %v452 = vmul.f32 1.0, %v451
        %453 = vrot.lane.b32.xlu0 %v438, 64
        %v454 = vpop.permute.xlu0 %453
        %v455 = vtanh.pop %v454
        %456 = vrot.lane.b32.xlu0 %v438, 32
        %v457 = vpop.permute.xlu0 %456
        %v458 = vxor.u32 %v457, 2147483648
        %v459 = vmul.f32 %v458, 1.442695
        %v460 = vpow.pop %v459
        %v461 = vadd.f32 %v460, 1.0
        %v462 = vrcp.pop %v461
        %v463 = vmul.f32 1.0, %v462
        %v464 = vld [vmem:[#allocation5] sm:$0xff]
        %v465 = vmul.f32 %v452, %v464
        %v466 = vmul.f32 %v444, %v455
        %v467 = vadd.f32 %v465, %v466
        %v468 = vtanh.pop %v467
        %v469 = vmul.f32 %v463, %v468
        %470 = vst.msk [vmem:[#allocation5] sm:$0xff] %vm429, %v467
        %471 = vst.msk [vmem:[#allocation4] sm:$0xff] %vm429, %v469
        %v472 = vld [vmem:[#allocation4] sm:$0xff]
        %473 = vst [vmem:[#allocation3] sm:$0xff] %v472
        %v474 = vld [vmem:[#allocation4] sm:$0xff]
        %v475 = vpack.c.bf16 %v474, %v474
        %s476 = scalar_lea.vmem [#allocation2], 8
        %v477 = vld [vmem:[%s476] sm:$0xff]
        %v478 = vld [vmem:[%s220] sm:$0xf]
        %v479 = vld [vmem:[%s220 + $0x4] sm:$0xf]
        %v480 = vld [vmem:[%s220 + $0x8] sm:$0xf]
        %v481 = vld [vmem:[%s220 + $0xc] sm:$0xf]
        %v482 = vld [vmem:[%s220 + $0x10] sm:$0xf]
        %v483 = vld [vmem:[%s220 + $0x14] sm:$0xf]
        %v484 = vld [vmem:[%s220 + $0x18] sm:$0xf]
        %v485 = vld [vmem:[%s220 + $0x1c] sm:$0xf]
        %v486 = vld [vmem:[%s220 + $0x20] sm:$0xf]
        %v487 = vld [vmem:[%s220 + $0x24] sm:$0xf]
        %v488 = vld [vmem:[%s220 + $0x28] sm:$0xf]
        %v489 = vld [vmem:[%s220 + $0x2c] sm:$0xf]
        %v490 = vld [vmem:[%s220 + $0x30] sm:$0xf]
        %v491 = vld [vmem:[%s220 + $0x34] sm:$0xf]
        %v492 = vld [vmem:[%s220 + $0x38] sm:$0xf]
        %v493 = vld [vmem:[%s220 + $0x3c] sm:$0xf]
        %v510 = vunpack.c.l.b16 %v478
        %v511 = vunpack.c.l.b16 %v479
        %v512 = vunpack.c.l.b16 %v480
        %v513 = vunpack.c.l.b16 %v481
        %v514 = vunpack.c.l.b16 %v482
        %v515 = vunpack.c.l.b16 %v483
        %v516 = vunpack.c.l.b16 %v484
        %v517 = vunpack.c.l.b16 %v485
        %v518 = vunpack.c.l.b16 %v486
        %v519 = vunpack.c.l.b16 %v487
        %v520 = vunpack.c.l.b16 %v488
        %v521 = vunpack.c.l.b16 %v489
        %v522 = vunpack.c.l.b16 %v490
        %v523 = vunpack.c.l.b16 %v491
        %v524 = vunpack.c.l.b16 %v492
        %v525 = vunpack.c.l.b16 %v493
        %v526 = vpack.c.b16 %v511, %v510
        %v527 = vpack.c.b16 %v513, %v512
        %v528 = vpack.c.b16 %v515, %v514
        %v529 = vpack.c.b16 %v517, %v516
        %v530 = vpack.c.b16 %v519, %v518
        %v531 = vpack.c.b16 %v521, %v520
        %v532 = vpack.c.b16 %v523, %v522
        %v533 = vpack.c.b16 %v525, %v524
        %542 = vmatprep.subr.bf16.mxu0 0
        %543 = vmatpush1.bf16.msra.mxu0 %v526
        %544 = vmatprep.subr.bf16.mxu0 0
        %545 = vmatpush1.bf16.msra.mxu0 %v527
        %546 = vmatprep.subr.bf16.mxu0 0
        %547 = vmatpush1.bf16.msra.mxu0 %v528
        %548 = vmatprep.subr.bf16.mxu0 0
        %549 = vmatpush1.bf16.msra.mxu0 %v529
        %550 = vmatprep.subr.bf16.mxu0 0
        %551 = vmatpush1.bf16.msra.mxu0 %v530
        %552 = vmatprep.subr.bf16.mxu0 0
        %553 = vmatpush1.bf16.msra.mxu0 %v531
        %554 = vmatprep.subr.bf16.mxu0 0
        %555 = vmatpush1.bf16.msra.mxu0 %v532
        %556 = vmatprep.subr.bf16.mxu0 0
        %557 = vmatpush1.bf16.msra.mxu0 %v533
        %558 = vmatprep.subr.bf16.mxu0 0
        %559 = vmatpush1.bf16.msra.mxu0 0
        %560 = vmatprep.subr.bf16.mxu0 0
        %561 = vmatpush1.bf16.msra.mxu0 0
        %562 = vmatprep.subr.bf16.mxu0 0
        %563 = vmatpush1.bf16.msra.mxu0 0
        %564 = vmatprep.subr.bf16.mxu0 0
        %565 = vmatpush1.bf16.msra.mxu0 0
        %566 = vmatprep.subr.bf16.mxu0 0
        %567 = vmatpush1.bf16.msra.mxu0 0
        %568 = vmatprep.subr.bf16.mxu0 0
        %569 = vmatpush1.bf16.msra.mxu0 0
        %570 = vmatprep.subr.bf16.mxu0 0
        %571 = vmatpush1.bf16.msra.mxu0 0
        %572 = vmatprep.subr.bf16.mxu0 0
        %573 = vmatpush1.bf16.msra.mxu0 0
        %574 = vmatprep.mubr.bf16.mxu0 0
        %575 = vmatmul.mubr.bf16.gmra.mrb[0].mxu0 %v475
        %v576 = vpop.f32.mrb[0].mxu0
        %v577 = vadd.f32 0.0, %v576
        %v578 = vpop.f32.mrb[0].mxu0
        %v579 = vpop.f32.mrb[0].mxu0
        %v580 = vpop.f32.mrb[0].mxu0
        %581 = vdwg.mxu0
        %v582 = vadd.f32 %v477, %v577
        %v583 = vxor.u32 %v582, 2147483648
        %v584 = vmul.f32 %v583, 1.442695
        %v585 = vpow.pop %v584
        %v586 = vadd.f32 %v585, 1.0
        %v587 = vrcp.pop %v586
        %v588 = vmul.f32 1.0, %v587
        %589 = vrot.lane.b32.xlu0 %v582, 96
        %v590 = vpop.permute.xlu0 %589
        %v591 = vxor.u32 %v590, 2147483648
        %v592 = vmul.f32 %v591, 1.442695
        %v593 = vpow.pop %v592
        %v594 = vadd.f32 %v593, 1.0
        %v595 = vrcp.pop %v594
        %v596 = vmul.f32 1.0, %v595
        %597 = vrot.lane.b32.xlu0 %v582, 64
        %v598 = vpop.permute.xlu0 %597
        %v599 = vtanh.pop %v598
        %600 = vrot.lane.b32.xlu0 %v582, 32
        %v601 = vpop.permute.xlu0 %600
        %v602 = vxor.u32 %v601, 2147483648
        %v603 = vmul.f32 %v602, 1.442695
        %v604 = vpow.pop %v603
        %v605 = vadd.f32 %v604, 1.0
        %v606 = vrcp.pop %v605
        %v607 = vmul.f32 1.0, %v606
        %v608 = vld [vmem:[#allocation5] sm:$0xff]
        %v609 = vmul.f32 %v596, %v608
        %v610 = vmul.f32 %v588, %v599
        %v611 = vadd.f32 %v609, %v610
        %v612 = vtanh.pop %v611
        %v613 = vmul.f32 %v607, %v612
        %614 = vst.msk [vmem:[#allocation5] sm:$0xff] %vm429, %v611
        %615 = vst.msk [vmem:[#allocation4] sm:$0xff] %vm429, %v613
        %v616 = vld [vmem:[#allocation4] sm:$0xff]
        %s617 = scalar_lea.vmem [#allocation3], 8
        %618 = vst [vmem:[%s617] sm:$0xff] %v616
        %v619 = vld [vmem:[#allocation4] sm:$0xff]
        %v620 = vpack.c.bf16 %v619, %v619
        %s621 = scalar_lea.vmem [#allocation2], 16
        %v622 = vld [vmem:[%s621] sm:$0xff]
        %v623 = vld [vmem:[%s220] sm:$0xf]
        %v624 = vld [vmem:[%s220 + $0x4] sm:$0xf]
        %v625 = vld [vmem:[%s220 + $0x8] sm:$0xf]
        %v626 = vld [vmem:[%s220 + $0xc] sm:$0xf]
        %v627 = vld [vmem:[%s220 + $0x10] sm:$0xf]
        %v628 = vld [vmem:[%s220 + $0x14] sm:$0xf]
        %v629 = vld [vmem:[%s220 + $0x18] sm:$0xf]
        %v630 = vld [vmem:[%s220 + $0x1c] sm:$0xf]
        %v631 = vld [vmem:[%s220 + $0x20] sm:$0xf]
        %v632 = vld [vmem:[%s220 + $0x24] sm:$0xf]
        %v633 = vld [vmem:[%s220 + $0x28] sm:$0xf]
        %v634 = vld [vmem:[%s220 + $0x2c] sm:$0xf]
        %v635 = vld [vmem:[%s220 + $0x30] sm:$0xf]
        %v636 = vld [vmem:[%s220 + $0x34] sm:$0xf]
        %v637 = vld [vmem:[%s220 + $0x38] sm:$0xf]
        %v638 = vld [vmem:[%s220 + $0x3c] sm:$0xf]
        %v655 = vunpack.c.l.b16 %v623
        %v656 = vunpack.c.l.b16 %v624
        %v657 = vunpack.c.l.b16 %v625
        %v658 = vunpack.c.l.b16 %v626
        %v659 = vunpack.c.l.b16 %v627
        %v660 = vunpack.c.l.b16 %v628
        %v661 = vunpack.c.l.b16 %v629
        %v662 = vunpack.c.l.b16 %v630
        %v663 = vunpack.c.l.b16 %v631
        %v664 = vunpack.c.l.b16 %v632
        %v665 = vunpack.c.l.b16 %v633
        %v666 = vunpack.c.l.b16 %v634
        %v667 = vunpack.c.l.b16 %v635
        %v668 = vunpack.c.l.b16 %v636
        %v669 = vunpack.c.l.b16 %v637
        %v670 = vunpack.c.l.b16 %v638
        %v671 = vpack.c.b16 %v656, %v655
        %v672 = vpack.c.b16 %v658, %v657
        %v673 = vpack.c.b16 %v660, %v659
        %v674 = vpack.c.b16 %v662, %v661
        %v675 = vpack.c.b16 %v664, %v663
        %v676 = vpack.c.b16 %v666, %v665
        %v677 = vpack.c.b16 %v668, %v667
        %v678 = vpack.c.b16 %v670, %v669
        %687 = vmatprep.subr.bf16.mxu0 0
        %688 = vmatpush1.bf16.msra.mxu0 %v671
        %689 = vmatprep.subr.bf16.mxu0 0
        %690 = vmatpush1.bf16.msra.mxu0 %v672
        %691 = vmatprep.subr.bf16.mxu0 0
        %692 = vmatpush1.bf16.msra.mxu0 %v673
        %693 = vmatprep.subr.bf16.mxu0 0
        %694 = vmatpush1.bf16.msra.mxu0 %v674
        %695 = vmatprep.subr.bf16.mxu0 0
        %696 = vmatpush1.bf16.msra.mxu0 %v675
        %697 = vmatprep.subr.bf16.mxu0 0
        %698 = vmatpush1.bf16.msra.mxu0 %v676
        %699 = vmatprep.subr.bf16.mxu0 0
        %700 = vmatpush1.bf16.msra.mxu0 %v677
        %701 = vmatprep.subr.bf16.mxu0 0
        %702 = vmatpush1.bf16.msra.mxu0 %v678
        %703 = vmatprep.subr.bf16.mxu0 0
        %704 = vmatpush1.bf16.msra.mxu0 0
        %705 = vmatprep.subr.bf16.mxu0 0
        %706 = vmatpush1.bf16.msra.mxu0 0
        %707 = vmatprep.subr.bf16.mxu0 0
        %708 = vmatpush1.bf16.msra.mxu0 0
        %709 = vmatprep.subr.bf16.mxu0 0
        %710 = vmatpush1.bf16.msra.mxu0 0
        %711 = vmatprep.subr.bf16.mxu0 0
        %712 = vmatpush1.bf16.msra.mxu0 0
        %713 = vmatprep.subr.bf16.mxu0 0
        %714 = vmatpush1.bf16.msra.mxu0 0
        %715 = vmatprep.subr.bf16.mxu0 0
        %716 = vmatpush1.bf16.msra.mxu0 0
        %717 = vmatprep.subr.bf16.mxu0 0
        %718 = vmatpush1.bf16.msra.mxu0 0
        %719 = vmatprep.mubr.bf16.mxu0 0
        %720 = vmatmul.mubr.bf16.gmra.mrb[0].mxu0 %v620
        %v721 = vpop.f32.mrb[0].mxu0
        %v722 = vadd.f32 0.0, %v721
        %v723 = vpop.f32.mrb[0].mxu0
        %v724 = vpop.f32.mrb[0].mxu0
        %v725 = vpop.f32.mrb[0].mxu0
        %726 = vdwg.mxu0
        %v727 = vadd.f32 %v622, %v722
        %v728 = vxor.u32 %v727, 2147483648
        %v729 = vmul.f32 %v728, 1.442695
        %v730 = vpow.pop %v729
        %v731 = vadd.f32 %v730, 1.0
        %v732 = vrcp.pop %v731
        %v733 = vmul.f32 1.0, %v732
        %734 = vrot.lane.b32.xlu0 %v727, 96
        %v735 = vpop.permute.xlu0 %734
        %v736 = vxor.u32 %v735, 2147483648
        %v737 = vmul.f32 %v736, 1.442695
        %v738 = vpow.pop %v737
        %v739 = vadd.f32 %v738, 1.0
        %v740 = vrcp.pop %v739
        %v741 = vmul.f32 1.0, %v740
        %742 = vrot.lane.b32.xlu0 %v727, 64
        %v743 = vpop.permute.xlu0 %742
        %v744 = vtanh.pop %v743
        %745 = vrot.lane.b32.xlu0 %v727, 32
        %v746 = vpop.permute.xlu0 %745
        %v747 = vxor.u32 %v746, 2147483648
        %v748 = vmul.f32 %v747, 1.442695
        %v749 = vpow.pop %v748
        %v750 = vadd.f32 %v749, 1.0
        %v751 = vrcp.pop %v750
        %v752 = vmul.f32 1.0, %v751
        %v753 = vld [vmem:[#allocation5] sm:$0xff]
        %v754 = vmul.f32 %v741, %v753
        %v755 = vmul.f32 %v733, %v744
        %v756 = vadd.f32 %v754, %v755
        %v757 = vtanh.pop %v756
        %v758 = vmul.f32 %v752, %v757
        %759 = vst.msk [vmem:[#allocation5] sm:$0xff] %vm429, %v756
        %760 = vst.msk [vmem:[#allocation4] sm:$0xff] %vm429, %v758
        %v761 = vld [vmem:[#allocation4] sm:$0xff]
        %s762 = scalar_lea.vmem [#allocation3], 16
        %763 = vst [vmem:[%s762] sm:$0xff] %v761
        %v764 = vld [vmem:[#allocation4] sm:$0xff]
        %v765 = vpack.c.bf16 %v764, %v764
        %s766 = scalar_lea.vmem [#allocation2], 24
        %v767 = vld [vmem:[%s766] sm:$0xff]
        %v768 = vld [vmem:[%s220] sm:$0xf]
        %v769 = vld [vmem:[%s220 + $0x4] sm:$0xf]
        %v770 = vld [vmem:[%s220 + $0x8] sm:$0xf]
        %v771 = vld [vmem:[%s220 + $0xc] sm:$0xf]
        %v772 = vld [vmem:[%s220 + $0x10] sm:$0xf]
        %v773 = vld [vmem:[%s220 + $0x14] sm:$0xf]
        %v774 = vld [vmem:[%s220 + $0x18] sm:$0xf]
        %v775 = vld [vmem:[%s220 + $0x1c] sm:$0xf]
        %v776 = vld [vmem:[%s220 + $0x20] sm:$0xf]
        %v777 = vld [vmem:[%s220 + $0x24] sm:$0xf]
        %v778 = vld [vmem:[%s220 + $0x28] sm:$0xf]
        %v779 = vld [vmem:[%s220 + $0x2c] sm:$0xf]
        %v780 = vld [vmem:[%s220 + $0x30] sm:$0xf]
        %v781 = vld [vmem:[%s220 + $0x34] sm:$0xf]
        %v782 = vld [vmem:[%s220 + $0x38] sm:$0xf]
        %v783 = vld [vmem:[%s220 + $0x3c] sm:$0xf]
        %v800 = vunpack.c.l.b16 %v768
        %v801 = vunpack.c.l.b16 %v769
        %v802 = vunpack.c.l.b16 %v770
        %v803 = vunpack.c.l.b16 %v771
        %v804 = vunpack.c.l.b16 %v772
        %v805 = vunpack.c.l.b16 %v773
        %v806 = vunpack.c.l.b16 %v774
        %v807 = vunpack.c.l.b16 %v775
        %v808 = vunpack.c.l.b16 %v776
        %v809 = vunpack.c.l.b16 %v777
        %v810 = vunpack.c.l.b16 %v778
        %v811 = vunpack.c.l.b16 %v779
        %v812 = vunpack.c.l.b16 %v780
        %v813 = vunpack.c.l.b16 %v781
        %v814 = vunpack.c.l.b16 %v782
        %v815 = vunpack.c.l.b16 %v783
        %v816 = vpack.c.b16 %v801, %v800
        %v817 = vpack.c.b16 %v803, %v802
        %v818 = vpack.c.b16 %v805, %v804
        %v819 = vpack.c.b16 %v807, %v806
        %v820 = vpack.c.b16 %v809, %v808
        %v821 = vpack.c.b16 %v811, %v810
        %v822 = vpack.c.b16 %v813, %v812
        %v823 = vpack.c.b16 %v815, %v814
        %832 = vmatprep.subr.bf16.mxu0 0
        %833 = vmatpush1.bf16.msra.mxu0 %v816
        %834 = vmatprep.subr.bf16.mxu0 0
        %835 = vmatpush1.bf16.msra.mxu0 %v817
        %836 = vmatprep.subr.bf16.mxu0 0
        %837 = vmatpush1.bf16.msra.mxu0 %v818
        %838 = vmatprep.subr.bf16.mxu0 0
        %839 = vmatpush1.bf16.msra.mxu0 %v819
        %840 = vmatprep.subr.bf16.mxu0 0
        %841 = vmatpush1.bf16.msra.mxu0 %v820
        %842 = vmatprep.subr.bf16.mxu0 0
        %843 = vmatpush1.bf16.msra.mxu0 %v821
        %844 = vmatprep.subr.bf16.mxu0 0
        %845 = vmatpush1.bf16.msra.mxu0 %v822
        %846 = vmatprep.subr.bf16.mxu0 0
        %847 = vmatpush1.bf16.msra.mxu0 %v823
        %848 = vmatprep.subr.bf16.mxu0 0
        %849 = vmatpush1.bf16.msra.mxu0 0
        %850 = vmatprep.subr.bf16.mxu0 0
        %851 = vmatpush1.bf16.msra.mxu0 0
        %852 = vmatprep.subr.bf16.mxu0 0
        %853 = vmatpush1.bf16.msra.mxu0 0
        %854 = vmatprep.subr.bf16.mxu0 0
        %855 = vmatpush1.bf16.msra.mxu0 0
        %856 = vmatprep.subr.bf16.mxu0 0
        %857 = vmatpush1.bf16.msra.mxu0 0
        %858 = vmatprep.subr.bf16.mxu0 0
        %859 = vmatpush1.bf16.msra.mxu0 0
        %860 = vmatprep.subr.bf16.mxu0 0
        %861 = vmatpush1.bf16.msra.mxu0 0
        %862 = vmatprep.subr.bf16.mxu0 0
        %863 = vmatpush1.bf16.msra.mxu0 0
        %864 = vmatprep.mubr.bf16.mxu0 0
        %865 = vmatmul.mubr.bf16.gmra.mrb[0].mxu0 %v765
        %v866 = vpop.f32.mrb[0].mxu0
        %v867 = vadd.f32 0.0, %v866
        %v868 = vpop.f32.mrb[0].mxu0
        %v869 = vpop.f32.mrb[0].mxu0
        %v870 = vpop.f32.mrb[0].mxu0
        %871 = vdwg.mxu0
        %v872 = vadd.f32 %v767, %v867
        %v873 = vxor.u32 %v872, 2147483648
        %v874 = vmul.f32 %v873, 1.442695
        %v875 = vpow.pop %v874
        %v876 = vadd.f32 %v875, 1.0
        %v877 = vrcp.pop %v876
        %v878 = vmul.f32 1.0, %v877
        %879 = vrot.lane.b32.xlu0 %v872, 96
        %v880 = vpop.permute.xlu0 %879
        %v881 = vxor.u32 %v880, 2147483648
        %v882 = vmul.f32 %v881, 1.442695
        %v883 = vpow.pop %v882
        %v884 = vadd.f32 %v883, 1.0
        %v885 = vrcp.pop %v884
        %v886 = vmul.f32 1.0, %v885
        %887 = vrot.lane.b32.xlu0 %v872, 64
        %v888 = vpop.permute.xlu0 %887
        %v889 = vtanh.pop %v888
        %890 = vrot.lane.b32.xlu0 %v872, 32
        %v891 = vpop.permute.xlu0 %890
        %v892 = vxor.u32 %v891, 2147483648
        %v893 = vmul.f32 %v892, 1.442695
        %v894 = vpow.pop %v893
        %v895 = vadd.f32 %v894, 1.0
        %v896 = vrcp.pop %v895
        %v897 = vmul.f32 1.0, %v896
        %v898 = vld [vmem:[#allocation5] sm:$0xff]
        %v899 = vmul.f32 %v886, %v898
        %v900 = vmul.f32 %v878, %v889
        %v901 = vadd.f32 %v899, %v900
        %v902 = vtanh.pop %v901
        %v903 = vmul.f32 %v897, %v902
        %904 = vst.msk [vmem:[#allocation5] sm:$0xff] %vm429, %v901
        %905 = vst.msk [vmem:[#allocation4] sm:$0xff] %vm429, %v903
        %v906 = vld [vmem:[#allocation4] sm:$0xff]
        %s907 = scalar_lea.vmem [#allocation3], 24
        %908 = vst [vmem:[%s907] sm:$0xff] %v906
        %v909 = vld [vmem:[#allocation4] sm:$0xff]
        %v910 = vpack.c.bf16 %v909, %v909
        %s911 = scalar_lea.vmem [#allocation2], 32
        %v912 = vld [vmem:[%s911] sm:$0xff]
        %v913 = vld [vmem:[%s220] sm:$0xf]
        %v914 = vld [vmem:[%s220 + $0x4] sm:$0xf]
        %v915 = vld [vmem:[%s220 + $0x8] sm:$0xf]
        %v916 = vld [vmem:[%s220 + $0xc] sm:$0xf]
        %v917 = vld [vmem:[%s220 + $0x10] sm:$0xf]
        %v918 = vld [vmem:[%s220 + $0x14] sm:$0xf]
        %v919 = vld [vmem:[%s220 + $0x18] sm:$0xf]
        %v920 = vld [vmem:[%s220 + $0x1c] sm:$0xf]
        %v921 = vld [vmem:[%s220 + $0x20] sm:$0xf]
        %v922 = vld [vmem:[%s220 + $0x24] sm:$0xf]
        %v923 = vld [vmem:[%s220 + $0x28] sm:$0xf]
        %v924 = vld [vmem:[%s220 + $0x2c] sm:$0xf]
        %v925 = vld [vmem:[%s220 + $0x30] sm:$0xf]
        %v926 = vld [vmem:[%s220 + $0x34] sm:$0xf]
        %v927 = vld [vmem:[%s220 + $0x38] sm:$0xf]
        %v928 = vld [vmem:[%s220 + $0x3c] sm:$0xf]
        %v945 = vunpack.c.l.b16 %v913
        %v946 = vunpack.c.l.b16 %v914
        %v947 = vunpack.c.l.b16 %v915
        %v948 = vunpack.c.l.b16 %v916
        %v949 = vunpack.c.l.b16 %v917
        %v950 = vunpack.c.l.b16 %v918
        %v951 = vunpack.c.l.b16 %v919
        %v952 = vunpack.c.l.b16 %v920
        %v953 = vunpack.c.l.b16 %v921
        %v954 = vunpack.c.l.b16 %v922
        %v955 = vunpack.c.l.b16 %v923
        %v956 = vunpack.c.l.b16 %v924
        %v957 = vunpack.c.l.b16 %v925
        %v958 = vunpack.c.l.b16 %v926
        %v959 = vunpack.c.l.b16 %v927
        %v960 = vunpack.c.l.b16 %v928
        %v961 = vpack.c.b16 %v946, %v945
        %v962 = vpack.c.b16 %v948, %v947
        %v963 = vpack.c.b16 %v950, %v949
        %v964 = vpack.c.b16 %v952, %v951
        %v965 = vpack.c.b16 %v954, %v953
        %v966 = vpack.c.b16 %v956, %v955
        %v967 = vpack.c.b16 %v958, %v957
        %v968 = vpack.c.b16 %v960, %v959
        %977 = vmatprep.subr.bf16.mxu0 0
        %978 = vmatpush1.bf16.msra.mxu0 %v961
        %979 = vmatprep.subr.bf16.mxu0 0
        %980 = vmatpush1.bf16.msra.mxu0 %v962
        %981 = vmatprep.subr.bf16.mxu0 0
        %982 = vmatpush1.bf16.msra.mxu0 %v963
        %983 = vmatprep.subr.bf16.mxu0 0
        %984 = vmatpush1.bf16.msra.mxu0 %v964
        %985 = vmatprep.subr.bf16.mxu0 0
        %986 = vmatpush1.bf16.msra.mxu0 %v965
        %987 = vmatprep.subr.bf16.mxu0 0
        %988 = vmatpush1.bf16.msra.mxu0 %v966
        %989 = vmatprep.subr.bf16.mxu0 0
        %990 = vmatpush1.bf16.msra.mxu0 %v967
        %991 = vmatprep.subr.bf16.mxu0 0
        %992 = vmatpush1.bf16.msra.mxu0 %v968
        %993 = vmatprep.subr.bf16.mxu0 0
        %994 = vmatpush1.bf16.msra.mxu0 0
        %995 = vmatprep.subr.bf16.mxu0 0
        %996 = vmatpush1.bf16.msra.mxu0 0
        %997 = vmatprep.subr.bf16.mxu0 0
        %998 = vmatpush1.bf16.msra.mxu0 0
        %999 = vmatprep.subr.bf16.mxu0 0
        %1000 = vmatpush1.bf16.msra.mxu0 0
        %1001 = vmatprep.subr.bf16.mxu0 0
        %1002 = vmatpush1.bf16.msra.mxu0 0
        %1003 = vmatprep.subr.bf16.mxu0 0
        %1004 = vmatpush1.bf16.msra.mxu0 0
        %1005 = vmatprep.subr.bf16.mxu0 0
        %1006 = vmatpush1.bf16.msra.mxu0 0
        %1007 = vmatprep.subr.bf16.mxu0 0
        %1008 = vmatpush1.bf16.msra.mxu0 0
        %1009 = vmatprep.mubr.bf16.mxu0 0
        %1010 = vmatmul.mubr.bf16.gmra.mrb[0].mxu0 %v910
        %v1011 = vpop.f32.mrb[0].mxu0
        %v1012 = vadd.f32 0.0, %v1011
        %v1013 = vpop.f32.mrb[0].mxu0
        %v1014 = vpop.f32.mrb[0].mxu0
        %v1015 = vpop.f32.mrb[0].mxu0
        %1016 = vdwg.mxu0
        %v1017 = vadd.f32 %v912, %v1012
        %v1018 = vxor.u32 %v1017, 2147483648
        %v1019 = vmul.f32 %v1018, 1.442695
        %v1020 = vpow.pop %v1019
        %v1021 = vadd.f32 %v1020, 1.0
        %v1022 = vrcp.pop %v1021
        %v1023 = vmul.f32 1.0, %v1022
        %1024 = vrot.lane.b32.xlu0 %v1017, 96
        %v1025 = vpop.permute.xlu0 %1024
        %v1026 = vxor.u32 %v1025, 2147483648
        %v1027 = vmul.f32 %v1026, 1.442695
        %v1028 = vpow.pop %v1027
        %v1029 = vadd.f32 %v1028, 1.0
        %v1030 = vrcp.pop %v1029
        %v1031 = vmul.f32 1.0, %v1030
        %1032 = vrot.lane.b32.xlu0 %v1017, 64
        %v1033 = vpop.permute.xlu0 %1032
        %v1034 = vtanh.pop %v1033
        %1035 = vrot.lane.b32.xlu0 %v1017, 32
        %v1036 = vpop.permute.xlu0 %1035
        %v1037 = vxor.u32 %v1036, 2147483648
        %v1038 = vmul.f32 %v1037, 1.442695
        %v1039 = vpow.pop %v1038
        %v1040 = vadd.f32 %v1039, 1.0
        %v1041 = vrcp.pop %v1040
        %v1042 = vmul.f32 1.0, %v1041
        %v1043 = vld [vmem:[#allocation5] sm:$0xff]
        %v1044 = vmul.f32 %v1031, %v1043
        %v1045 = vmul.f32 %v1023, %v1034
        %v1046 = vadd.f32 %v1044, %v1045
        %v1047 = vtanh.pop %v1046
        %v1048 = vmul.f32 %v1042, %v1047
        %1049 = vst.msk [vmem:[#allocation5] sm:$0xff] %vm429, %v1046
        %1050 = vst.msk [vmem:[#allocation4] sm:$0xff] %vm429, %v1048
        %v1051 = vld [vmem:[#allocation4] sm:$0xff]
        %s1052 = scalar_lea.vmem [#allocation3], 32
        %1053 = vst [vmem:[%s1052] sm:$0xff] %v1051
        %v1054 = vld [vmem:[#allocation4] sm:$0xff]
        %v1055 = vpack.c.bf16 %v1054, %v1054
        %s1056 = scalar_lea.vmem [#allocation2], 40
        %v1057 = vld [vmem:[%s1056] sm:$0xff]
        %v1058 = vld [vmem:[%s220] sm:$0xf]
        %v1059 = vld [vmem:[%s220 + $0x4] sm:$0xf]
        %v1060 = vld [vmem:[%s220 + $0x8] sm:$0xf]
        %v1061 = vld [vmem:[%s220 + $0xc] sm:$0xf]
        %v1062 = vld [vmem:[%s220 + $0x10] sm:$0xf]
        %v1063 = vld [vmem:[%s220 + $0x14] sm:$0xf]
        %v1064 = vld [vmem:[%s220 + $0x18] sm:$0xf]
        %v1065 = vld [vmem:[%s220 + $0x1c] sm:$0xf]
        %v1066 = vld [vmem:[%s220 + $0x20] sm:$0xf]
        %v1067 = vld [vmem:[%s220 + $0x24] sm:$0xf]
        %v1068 = vld [vmem:[%s220 + $0x28] sm:$0xf]
        %v1069 = vld [vmem:[%s220 + $0x2c] sm:$0xf]
        %v1070 = vld [vmem:[%s220 + $0x30] sm:$0xf]
        %v1071 = vld [vmem:[%s220 + $0x34] sm:$0xf]
        %v1072 = vld [vmem:[%s220 + $0x38] sm:$0xf]
        %v1073 = vld [vmem:[%s220 + $0x3c] sm:$0xf]
        %v1090 = vunpack.c.l.b16 %v1058
        %v1091 = vunpack.c.l.b16 %v1059
        %v1092 = vunpack.c.l.b16 %v1060
        %v1093 = vunpack.c.l.b16 %v1061
        %v1094 = vunpack.c.l.b16 %v1062
        %v1095 = vunpack.c.l.b16 %v1063
        %v1096 = vunpack.c.l.b16 %v1064
        %v1097 = vunpack.c.l.b16 %v1065
        %v1098 = vunpack.c.l.b16 %v1066
        %v1099 = vunpack.c.l.b16 %v1067
        %v1100 = vunpack.c.l.b16 %v1068
        %v1101 = vunpack.c.l.b16 %v1069
        %v1102 = vunpack.c.l.b16 %v1070
        %v1103 = vunpack.c.l.b16 %v1071
        %v1104 = vunpack.c.l.b16 %v1072
        %v1105 = vunpack.c.l.b16 %v1073
        %v1106 = vpack.c.b16 %v1091, %v1090
        %v1107 = vpack.c.b16 %v1093, %v1092
        %v1108 = vpack.c.b16 %v1095, %v1094
        %v1109 = vpack.c.b16 %v1097, %v1096
        %v1110 = vpack.c.b16 %v1099, %v1098
        %v1111 = vpack.c.b16 %v1101, %v1100
        %v1112 = vpack.c.b16 %v1103, %v1102
        %v1113 = vpack.c.b16 %v1105, %v1104
        %1122 = vmatprep.subr.bf16.mxu0 0
        %1123 = vmatpush1.bf16.msra.mxu0 %v1106
        %1124 = vmatprep.subr.bf16.mxu0 0
        %1125 = vmatpush1.bf16.msra.mxu0 %v1107
        %1126 = vmatprep.subr.bf16.mxu0 0
        %1127 = vmatpush1.bf16.msra.mxu0 %v1108
        %1128 = vmatprep.subr.bf16.mxu0 0
        %1129 = vmatpush1.bf16.msra.mxu0 %v1109
        %1130 = vmatprep.subr.bf16.mxu0 0
        %1131 = vmatpush1.bf16.msra.mxu0 %v1110
        %1132 = vmatprep.subr.bf16.mxu0 0
        %1133 = vmatpush1.bf16.msra.mxu0 %v1111
        %1134 = vmatprep.subr.bf16.mxu0 0
        %1135 = vmatpush1.bf16.msra.mxu0 %v1112
        %1136 = vmatprep.subr.bf16.mxu0 0
        %1137 = vmatpush1.bf16.msra.mxu0 %v1113
        %1138 = vmatprep.subr.bf16.mxu0 0
        %1139 = vmatpush1.bf16.msra.mxu0 0
        %1140 = vmatprep.subr.bf16.mxu0 0
        %1141 = vmatpush1.bf16.msra.mxu0 0
        %1142 = vmatprep.subr.bf16.mxu0 0
        %1143 = vmatpush1.bf16.msra.mxu0 0
        %1144 = vmatprep.subr.bf16.mxu0 0
        %1145 = vmatpush1.bf16.msra.mxu0 0
        %1146 = vmatprep.subr.bf16.mxu0 0
        %1147 = vmatpush1.bf16.msra.mxu0 0
        %1148 = vmatprep.subr.bf16.mxu0 0
        %1149 = vmatpush1.bf16.msra.mxu0 0
        %1150 = vmatprep.subr.bf16.mxu0 0
        %1151 = vmatpush1.bf16.msra.mxu0 0
        %1152 = vmatprep.subr.bf16.mxu0 0
        %1153 = vmatpush1.bf16.msra.mxu0 0
        %1154 = vmatprep.mubr.bf16.mxu0 0
        %1155 = vmatmul.mubr.bf16.gmra.mrb[0].mxu0 %v1055
        %v1156 = vpop.f32.mrb[0].mxu0
        %v1157 = vadd.f32 0.0, %v1156
        %v1158 = vpop.f32.mrb[0].mxu0
        %v1159 = vpop.f32.mrb[0].mxu0
        %v1160 = vpop.f32.mrb[0].mxu0
        %1161 = vdwg.mxu0
        %v1162 = vadd.f32 %v1057, %v1157
        %v1163 = vxor.u32 %v1162, 2147483648
        %v1164 = vmul.f32 %v1163, 1.442695
        %v1165 = vpow.pop %v1164
        %v1166 = vadd.f32 %v1165, 1.0
        %v1167 = vrcp.pop %v1166
        %v1168 = vmul.f32 1.0, %v1167
        %1169 = vrot.lane.b32.xlu0 %v1162, 96
        %v1170 = vpop.permute.xlu0 %1169
        %v1171 = vxor.u32 %v1170, 2147483648
        %v1172 = vmul.f32 %v1171, 1.442695
        %v1173 = vpow.pop %v1172
        %v1174 = vadd.f32 %v1173, 1.0
        %v1175 = vrcp.pop %v1174
        %v1176 = vmul.f32 1.0, %v1175
        %1177 = vrot.lane.b32.xlu0 %v1162, 64
        %v1178 = vpop.permute.xlu0 %1177
        %v1179 = vtanh.pop %v1178
        %1180 = vrot.lane.b32.xlu0 %v1162, 32
        %v1181 = vpop.permute.xlu0 %1180
        %v1182 = vxor.u32 %v1181, 2147483648
        %v1183 = vmul.f32 %v1182, 1.442695
        %v1184 = vpow.pop %v1183
        %v1185 = vadd.f32 %v1184, 1.0
        %v1186 = vrcp.pop %v1185
        %v1187 = vmul.f32 1.0, %v1186
        %v1188 = vld [vmem:[#allocation5] sm:$0xff]
        %v1189 = vmul.f32 %v1176, %v1188
        %v1190 = vmul.f32 %v1168, %v1179
        %v1191 = vadd.f32 %v1189, %v1190
        %v1192 = vtanh.pop %v1191
        %v1193 = vmul.f32 %v1187, %v1192
        %1194 = vst.msk [vmem:[#allocation5] sm:$0xff] %vm429, %v1191
        %1195 = vst.msk [vmem:[#allocation4] sm:$0xff] %vm429, %v1193
        %v1196 = vld [vmem:[#allocation4] sm:$0xff]
        %s1197 = scalar_lea.vmem [#allocation3], 40
        %1198 = vst [vmem:[%s1197] sm:$0xff] %v1196
        %v1199 = vld [vmem:[#allocation4] sm:$0xff]
        %v1200 = vpack.c.bf16 %v1199, %v1199
        %s1201 = scalar_lea.vmem [#allocation2], 48
        %v1202 = vld [vmem:[%s1201] sm:$0xff]
        %v1203 = vld [vmem:[%s220] sm:$0xf]
        %v1204 = vld [vmem:[%s220 + $0x4] sm:$0xf]
        %v1205 = vld [vmem:[%s220 + $0x8] sm:$0xf]
        %v1206 = vld [vmem:[%s220 + $0xc] sm:$0xf]
        %v1207 = vld [vmem:[%s220 + $0x10] sm:$0xf]
        %v1208 = vld [vmem:[%s220 + $0x14] sm:$0xf]
        %v1209 = vld [vmem:[%s220 + $0x18] sm:$0xf]
        %v1210 = vld [vmem:[%s220 + $0x1c] sm:$0xf]
        %v1211 = vld [vmem:[%s220 + $0x20] sm:$0xf]
        %v1212 = vld [vmem:[%s220 + $0x24] sm:$0xf]
        %v1213 = vld [vmem:[%s220 + $0x28] sm:$0xf]
        %v1214 = vld [vmem:[%s220 + $0x2c] sm:$0xf]
        %v1215 = vld [vmem:[%s220 + $0x30] sm:$0xf]
        %v1216 = vld [vmem:[%s220 + $0x34] sm:$0xf]
        %v1217 = vld [vmem:[%s220 + $0x38] sm:$0xf]
        %v1218 = vld [vmem:[%s220 + $0x3c] sm:$0xf]
        %v1235 = vunpack.c.l.b16 %v1203
        %v1236 = vunpack.c.l.b16 %v1204
        %v1237 = vunpack.c.l.b16 %v1205
        %v1238 = vunpack.c.l.b16 %v1206
        %v1239 = vunpack.c.l.b16 %v1207
        %v1240 = vunpack.c.l.b16 %v1208
        %v1241 = vunpack.c.l.b16 %v1209
        %v1242 = vunpack.c.l.b16 %v1210
        %v1243 = vunpack.c.l.b16 %v1211
        %v1244 = vunpack.c.l.b16 %v1212
        %v1245 = vunpack.c.l.b16 %v1213
        %v1246 = vunpack.c.l.b16 %v1214
        %v1247 = vunpack.c.l.b16 %v1215
        %v1248 = vunpack.c.l.b16 %v1216
        %v1249 = vunpack.c.l.b16 %v1217
        %v1250 = vunpack.c.l.b16 %v1218
        %v1251 = vpack.c.b16 %v1236, %v1235
        %v1252 = vpack.c.b16 %v1238, %v1237
        %v1253 = vpack.c.b16 %v1240, %v1239
        %v1254 = vpack.c.b16 %v1242, %v1241
        %v1255 = vpack.c.b16 %v1244, %v1243
        %v1256 = vpack.c.b16 %v1246, %v1245
        %v1257 = vpack.c.b16 %v1248, %v1247
        %v1258 = vpack.c.b16 %v1250, %v1249
        %1267 = vmatprep.subr.bf16.mxu0 0
        %1268 = vmatpush1.bf16.msra.mxu0 %v1251
        %1269 = vmatprep.subr.bf16.mxu0 0
        %1270 = vmatpush1.bf16.msra.mxu0 %v1252
        %1271 = vmatprep.subr.bf16.mxu0 0
        %1272 = vmatpush1.bf16.msra.mxu0 %v1253
        %1273 = vmatprep.subr.bf16.mxu0 0
        %1274 = vmatpush1.bf16.msra.mxu0 %v1254
        %1275 = vmatprep.subr.bf16.mxu0 0
        %1276 = vmatpush1.bf16.msra.mxu0 %v1255
        %1277 = vmatprep.subr.bf16.mxu0 0
        %1278 = vmatpush1.bf16.msra.mxu0 %v1256
        %1279 = vmatprep.subr.bf16.mxu0 0
        %1280 = vmatpush1.bf16.msra.mxu0 %v1257
        %1281 = vmatprep.subr.bf16.mxu0 0
        %1282 = vmatpush1.bf16.msra.mxu0 %v1258
        %1283 = vmatprep.subr.bf16.mxu0 0
        %1284 = vmatpush1.bf16.msra.mxu0 0
        %1285 = vmatprep.subr.bf16.mxu0 0
        %1286 = vmatpush1.bf16.msra.mxu0 0
        %1287 = vmatprep.subr.bf16.mxu0 0
        %1288 = vmatpush1.bf16.msra.mxu0 0
        %1289 = vmatprep.subr.bf16.mxu0 0
        %1290 = vmatpush1.bf16.msra.mxu0 0
        %1291 = vmatprep.subr.bf16.mxu0 0
        %1292 = vmatpush1.bf16.msra.mxu0 0
        %1293 = vmatprep.subr.bf16.mxu0 0
        %1294 = vmatpush1.bf16.msra.mxu0 0
        %1295 = vmatprep.subr.bf16.mxu0 0
        %1296 = vmatpush1.bf16.msra.mxu0 0
        %1297 = vmatprep.subr.bf16.mxu0 0
        %1298 = vmatpush1.bf16.msra.mxu0 0
        %1299 = vmatprep.mubr.bf16.mxu0 0
        %1300 = vmatmul.mubr.bf16.gmra.mrb[0].mxu0 %v1200
        %v1301 = vpop.f32.mrb[0].mxu0
        %v1302 = vadd.f32 0.0, %v1301
        %v1303 = vpop.f32.mrb[0].mxu0
        %v1304 = vpop.f32.mrb[0].mxu0
        %v1305 = vpop.f32.mrb[0].mxu0
        %1306 = vdwg.mxu0
        %v1307 = vadd.f32 %v1202, %v1302
        %v1308 = vxor.u32 %v1307, 2147483648
        %v1309 = vmul.f32 %v1308, 1.442695
        %v1310 = vpow.pop %v1309
        %v1311 = vadd.f32 %v1310, 1.0
        %v1312 = vrcp.pop %v1311
        %v1313 = vmul.f32 1.0, %v1312
        %1314 = vrot.lane.b32.xlu0 %v1307, 96
        %v1315 = vpop.permute.xlu0 %1314
        %v1316 = vxor.u32 %v1315, 2147483648
        %v1317 = vmul.f32 %v1316, 1.442695
        %v1318 = vpow.pop %v1317
        %v1319 = vadd.f32 %v1318, 1.0
        %v1320 = vrcp.pop %v1319
        %v1321 = vmul.f32 1.0, %v1320
        %1322 = vrot.lane.b32.xlu0 %v1307, 64
        %v1323 = vpop.permute.xlu0 %1322
        %v1324 = vtanh.pop %v1323
        %1325 = vrot.lane.b32.xlu0 %v1307, 32
        %v1326 = vpop.permute.xlu0 %1325
        %v1327 = vxor.u32 %v1326, 2147483648
        %v1328 = vmul.f32 %v1327, 1.442695
        %v1329 = vpow.pop %v1328
        %v1330 = vadd.f32 %v1329, 1.0
        %v1331 = vrcp.pop %v1330
        %v1332 = vmul.f32 1.0, %v1331
        %v1333 = vld [vmem:[#allocation5] sm:$0xff]
        %v1334 = vmul.f32 %v1321, %v1333
        %v1335 = vmul.f32 %v1313, %v1324
        %v1336 = vadd.f32 %v1334, %v1335
        %v1337 = vtanh.pop %v1336
        %v1338 = vmul.f32 %v1332, %v1337
        %1339 = vst.msk [vmem:[#allocation5] sm:$0xff] %vm429, %v1336
        %1340 = vst.msk [vmem:[#allocation4] sm:$0xff] %vm429, %v1338
        %v1341 = vld [vmem:[#allocation4] sm:$0xff]
        %s1342 = scalar_lea.vmem [#allocation3], 48
        %1343 = vst [vmem:[%s1342] sm:$0xff] %v1341
        %v1344 = vld [vmem:[#allocation4] sm:$0xff]
        %v1345 = vpack.c.bf16 %v1344, %v1344
        %s1346 = scalar_lea.vmem [#allocation2], 56
        %v1347 = vld [vmem:[%s1346] sm:$0xff]
        %v1348 = vld [vmem:[%s220] sm:$0xf]
        %v1349 = vld [vmem:[%s220 + $0x4] sm:$0xf]
        %v1350 = vld [vmem:[%s220 + $0x8] sm:$0xf]
        %v1351 = vld [vmem:[%s220 + $0xc] sm:$0xf]
        %v1352 = vld [vmem:[%s220 + $0x10] sm:$0xf]
        %v1353 = vld [vmem:[%s220 + $0x14] sm:$0xf]
        %v1354 = vld [vmem:[%s220 + $0x18] sm:$0xf]
        %v1355 = vld [vmem:[%s220 + $0x1c] sm:$0xf]
        %v1356 = vld [vmem:[%s220 + $0x20] sm:$0xf]
        %v1357 = vld [vmem:[%s220 + $0x24] sm:$0xf]
        %v1358 = vld [vmem:[%s220 + $0x28] sm:$0xf]
        %v1359 = vld [vmem:[%s220 + $0x2c] sm:$0xf]
        %v1360 = vld [vmem:[%s220 + $0x30] sm:$0xf]
        %v1361 = vld [vmem:[%s220 + $0x34] sm:$0xf]
        %v1362 = vld [vmem:[%s220 + $0x38] sm:$0xf]
        %v1363 = vld [vmem:[%s220 + $0x3c] sm:$0xf]
        %v1380 = vunpack.c.l.b16 %v1348
        %v1381 = vunpack.c.l.b16 %v1349
        %v1382 = vunpack.c.l.b16 %v1350
        %v1383 = vunpack.c.l.b16 %v1351
        %v1384 = vunpack.c.l.b16 %v1352
        %v1385 = vunpack.c.l.b16 %v1353
        %v1386 = vunpack.c.l.b16 %v1354
        %v1387 = vunpack.c.l.b16 %v1355
        %v1388 = vunpack.c.l.b16 %v1356
        %v1389 = vunpack.c.l.b16 %v1357
        %v1390 = vunpack.c.l.b16 %v1358
        %v1391 = vunpack.c.l.b16 %v1359
        %v1392 = vunpack.c.l.b16 %v1360
        %v1393 = vunpack.c.l.b16 %v1361
        %v1394 = vunpack.c.l.b16 %v1362
        %v1395 = vunpack.c.l.b16 %v1363
        %v1396 = vpack.c.b16 %v1381, %v1380
        %v1397 = vpack.c.b16 %v1383, %v1382
        %v1398 = vpack.c.b16 %v1385, %v1384
        %v1399 = vpack.c.b16 %v1387, %v1386
        %v1400 = vpack.c.b16 %v1389, %v1388
        %v1401 = vpack.c.b16 %v1391, %v1390
        %v1402 = vpack.c.b16 %v1393, %v1392
        %v1403 = vpack.c.b16 %v1395, %v1394
        %1412 = vmatprep.subr.bf16.mxu0 0
        %1413 = vmatpush1.bf16.msra.mxu0 %v1396
        %1414 = vmatprep.subr.bf16.mxu0 0
        %1415 = vmatpush1.bf16.msra.mxu0 %v1397
        %1416 = vmatprep.subr.bf16.mxu0 0
        %1417 = vmatpush1.bf16.msra.mxu0 %v1398
        %1418 = vmatprep.subr.bf16.mxu0 0
        %1419 = vmatpush1.bf16.msra.mxu0 %v1399
        %1420 = vmatprep.subr.bf16.mxu0 0
        %1421 = vmatpush1.bf16.msra.mxu0 %v1400
        %1422 = vmatprep.subr.bf16.mxu0 0
        %1423 = vmatpush1.bf16.msra.mxu0 %v1401
        %1424 = vmatprep.subr.bf16.mxu0 0
        %1425 = vmatpush1.bf16.msra.mxu0 %v1402
        %1426 = vmatprep.subr.bf16.mxu0 0
        %1427 = vmatpush1.bf16.msra.mxu0 %v1403
        %1428 = vmatprep.subr.bf16.mxu0 0
        %1429 = vmatpush1.bf16.msra.mxu0 0
        %1430 = vmatprep.subr.bf16.mxu0 0
        %1431 = vmatpush1.bf16.msra.mxu0 0
        %1432 = vmatprep.subr.bf16.mxu0 0
        %1433 = vmatpush1.bf16.msra.mxu0 0
        %1434 = vmatprep.subr.bf16.mxu0 0
        %1435 = vmatpush1.bf16.msra.mxu0 0
        %1436 = vmatprep.subr.bf16.mxu0 0
        %1437 = vmatpush1.bf16.msra.mxu0 0
        %1438 = vmatprep.subr.bf16.mxu0 0
        %1439 = vmatpush1.bf16.msra.mxu0 0
        %1440 = vmatprep.subr.bf16.mxu0 0
        %1441 = vmatpush1.bf16.msra.mxu0 0
        %1442 = vmatprep.subr.bf16.mxu0 0
        %1443 = vmatpush1.bf16.msra.mxu0 0
        %1444 = vmatprep.mubr.bf16.mxu0 0
        %1445 = vmatmul.mubr.bf16.gmra.mrb[0].mxu0 %v1345
        %v1446 = vpop.f32.mrb[0].mxu0
        %v1447 = vadd.f32 0.0, %v1446
        %v1448 = vpop.f32.mrb[0].mxu0
        %v1449 = vpop.f32.mrb[0].mxu0
        %v1450 = vpop.f32.mrb[0].mxu0
        %1451 = vdwg.mxu0
        %v1452 = vadd.f32 %v1347, %v1447
        %v1453 = vxor.u32 %v1452, 2147483648
        %v1454 = vmul.f32 %v1453, 1.442695
        %v1455 = vpow.pop %v1454
        %v1456 = vadd.f32 %v1455, 1.0
        %v1457 = vrcp.pop %v1456
        %v1458 = vmul.f32 1.0, %v1457
        %1459 = vrot.lane.b32.xlu0 %v1452, 96
        %v1460 = vpop.permute.xlu0 %1459
        %v1461 = vxor.u32 %v1460, 2147483648
        %v1462 = vmul.f32 %v1461, 1.442695
        %v1463 = vpow.pop %v1462
        %v1464 = vadd.f32 %v1463, 1.0
        %v1465 = vrcp.pop %v1464
        %v1466 = vmul.f32 1.0, %v1465
        %1467 = vrot.lane.b32.xlu0 %v1452, 64
        %v1468 = vpop.permute.xlu0 %1467
        %v1469 = vtanh.pop %v1468
        %1470 = vrot.lane.b32.xlu0 %v1452, 32
        %v1471 = vpop.permute.xlu0 %1470
        %v1472 = vxor.u32 %v1471, 2147483648
        %v1473 = vmul.f32 %v1472, 1.442695
        %v1474 = vpow.pop %v1473
        %v1475 = vadd.f32 %v1474, 1.0
        %v1476 = vrcp.pop %v1475
        %v1477 = vmul.f32 1.0, %v1476
        %v1478 = vld [vmem:[#allocation5] sm:$0xff]
        %v1479 = vmul.f32 %v1466, %v1478
        %v1480 = vmul.f32 %v1458, %v1469
        %v1481 = vadd.f32 %v1479, %v1480
        %v1482 = vtanh.pop %v1481
        %v1483 = vmul.f32 %v1477, %v1482
        %1484 = vst.msk [vmem:[#allocation5] sm:$0xff] %vm429, %v1481
        %1485 = vst.msk [vmem:[#allocation4] sm:$0xff] %vm429, %v1483
        %v1486 = vld [vmem:[#allocation4] sm:$0xff]
        %s1487 = scalar_lea.vmem [#allocation3], 56
        %1488 = vst [vmem:[%s1487] sm:$0xff] %v1486
        %p1489 = scmp.eq.s32.totalorder %s27, 1
        // Predicated region
        $region57: #{tpu_custom_call.1} parent=31 // pred_check
          %p1490 = pneg %p1489
        $region58: #{tpu_custom_call.1} parent=31 // pred_check_branch
          %1492 = sbr.rel (%p1490) target = $region60
        $region59: #{tpu_custom_call.1} parent=31 // pred_region
          %v1493 = vld [vmem:[#allocation4] sm:$0xff]
          %1494 = vst [vmem:[#allocation12] sm:$0xff] %v1493
        $region60: #{tpu_custom_call.1} parent=31 // pred_fallthru
          _
        // Predicated region
        $region61: #{tpu_custom_call.1} parent=31 // pred_check
          %p1495 = pneg %p130
        $region62: #{tpu_custom_call.1} parent=31 // pred_check_branch
          %1497 = sbr.rel (%p1495) target = $region64
        $region63: #{tpu_custom_call.1} parent=31 // pred_region
          %s1499 = ssub.s32 128, 128
          %1500 = vsyncadd [#allocation9], %s1499
          %s1501 = smul.addr %s26, 128
          %s1502 = scalar_lea.hbm %s4, %s1501
          %s1504 = sshll.u32 [#allocation12], 4
          %s1505 = int_to_ptr.vmem [resolvable:$true] %s1504
          %1507 = dma.vmem_to_hbm [thread:$0]  %s1505, 128, %s1502, [#allocation9]
        $region64: #{tpu_custom_call.1} parent=31 // pred_fallthru
          _
        // Predicated region
        $region65: #{tpu_custom_call.1} parent=31 // pred_check
          %p1508 = pneg %p130
        $region66: #{tpu_custom_call.1} parent=31 // pred_check_branch
          %1510 = sbr.rel (%p1508) target = $region68
        $region67: #{tpu_custom_call.1} parent=31 // pred_region
          %1511 = dma.done [#allocation9], 128
        $region68: #{tpu_custom_call.1} parent=31 // pred_fallthru
          _
      $region32: #{tpu_custom_call.1} parent=5 // pred_fallthru
        _
      %p1512 = scmp.le.s32.totalorder 2, %s17
      // Predicated region
      $region69: #{tpu_custom_call.1} parent=5 // pred_check
        %p1513 = pneg %p1512
      $region70: #{tpu_custom_call.1} parent=5 // pred_check_branch
        %1515 = sbr.rel (%p1513) target = $region72
      $region71: #{tpu_custom_call.1} parent=5 // pred_region
        %s1516 = ssub.s32 %s17, 2
      $region72: #{tpu_custom_call.1} parent=5 // pred_fallthru
        _
    $region6: #{tpu_custom_call.1} parent=1 // loop_footer
      %s21 = sadd.s32 1, %s17
    $region7: #{tpu_custom_call.1} parent=1 // loop_footer_branch
      %16 = sbr.rel target = $region3
    $region8: #{tpu_custom_call.1} parent=1 // loop_exit
      _
    %1517 = vsyncpa [#allocation8], 1
    %s1518 = scalar_lea.sflag [#allocation8], 1
    %1519 = vsyncpa %s1518, 1
    %1520 = vsyncpa [#allocation11], 1
    %s1521 = scalar_lea.sflag [#allocation11], 1
    %1522 = vsyncpa %s1521, 1
    %1523 = vsyncpa [#allocation9], 1
    %s1524 = scalar_lea.sflag [#allocation9], 1
    %1525 = vsyncpa %s1524, 1
  %1526 = vsyncmov [#allocation6]
  %s1527 = vpop.sfrf %1526
  %p1528 = scmp.eq.s32.totalorder %s1527, 0
  %p1529 = pneg %p1528
  %1531 = shalt.err (%p1529)

</llo_original>
